<compile_context>
chip_gen: v7x
topology: tpu7x:2x2x1
jax: 0.10.0
libtpu: 0.0.40
codegen_flags: <defaults>
</compile_context>

<pallas_src>
import functools

import jax
import jax.numpy as jnp
from jax.experimental import pallas as pl
from jax.experimental.pallas import tpu as pltpu

_EPS = 1e-8


def _round_up(a, m):
    return ((a + m - 1) // m) * m


# ---------------------------------------------------------------------------
# Pallas kernel: TPS warp of the normalized sampling grid (per-pixel hot path).
# ---------------------------------------------------------------------------
def _tps_warp_grid_kernel(w_ref, ox_ref, oy_ref, *, h, w, th, tw, k):
    """w_ref: flat f32 SMEM vector [points(K,2) | rbf(K,2) | affine(3,2)].
    ox_ref / oy_ref: (th, tw) f32 tiles of the warped x / y planes."""
    ih = pl.program_id(0)
    iw = pl.program_id(1)

    # Pixel indices for this tile, generated in-register (no coords input).
    row = jax.lax.broadcasted_iota(jnp.int32, (th, tw), 0).astype(jnp.float32)
    col = jax.lax.broadcasted_iota(jnp.int32, (th, tw), 1).astype(jnp.float32)
    py = row + (ih * th).astype(jnp.float32)
    px = col + (iw * tw).astype(jnp.float32)

    # Normalized [-1, 1] coords (torch.linspace(-1, 1, n)[i] == -1 + i*2/(n-1)).
    sy = 2.0 / float(max(h - 1, 1))
    sx = 2.0 / float(max(w - 1, 1))
    y = py * sy - 1.0
    x = px * sx - 1.0

    aff = 4 * k  # offset of the affine (3, 2) block in the flat weight vector
    # Affine part: out = aff[0] + x * aff[1] + y * aff[2]
    acc_x = x * w_ref[aff + 2] + (y * w_ref[aff + 4] + w_ref[aff + 0])
    acc_y = x * w_ref[aff + 3] + (y * w_ref[aff + 5] + w_ref[aff + 1])

    # RBF part, unrolled over the K control points (VPU mul/add + EUP log).
    for j in range(k):
        dx = x - w_ref[2 * j + 0]
        dy = y - w_ref[2 * j + 1]
        d2 = dx * dx + dy * dy                       # >= 0 by construction
        u = 0.5 * d2 * jnp.log(d2 + _EPS)            # TPS kernel r^2*log(r)
        acc_x = acc_x + u * w_ref[2 * k + 2 * j + 0]
        acc_y = acc_y + u * w_ref[2 * k + 2 * j + 1]

    ox_ref[...] = acc_x
    oy_ref[...] = acc_y


def tps_warp_grid_pallas(points, rbf_weights, affine_weights, h, w):
    """points / rbf_weights: (K, 2); affine_weights: (3, 2).
    Returns the warped normalized sampling grid as planes (gx, gy), each (h, w)."""
    k = points.shape[0]
    wvec = jnp.concatenate(
        [points.reshape(-1), rbf_weights.reshape(-1),
         affine_weights.reshape(-1)]).astype(jnp.float32)          # (4K + 6,)

    tw = 128
    w_pad = _round_up(w, tw)
    h8 = _round_up(h, 8)
    if h8 <= 1024:
        th = h8
    else:
        n_blk = -(-h8 // 1024)                       # split H into ~1024-row tiles
        th = _round_up(-(-h8 // n_blk), 8)
    h_pad = _round_up(h8, th)

    kern = functools.partial(_tps_warp_grid_kernel, h=h, w=w, th=th, tw=tw, k=k)
    ox, oy = pl.pallas_call(
        kern,
        out_shape=(jax.ShapeDtypeStruct((h_pad, w_pad), jnp.float32),
                   jax.ShapeDtypeStruct((h_pad, w_pad), jnp.float32)),
        grid=(h_pad // th, w_pad // tw),
        in_specs=[pl.BlockSpec(memory_space=pltpu.MemorySpace.SMEM)],
        out_specs=(pl.BlockSpec((th, tw), lambda i, j: (i, j)),
                   pl.BlockSpec((th, tw), lambda i, j: (i, j))),
        compiler_params=pltpu.CompilerParams(
            dimension_semantics=("parallel", "parallel")),
    )(wvec)
    return ox[:h, :w], oy[:h, :w]


# ---------------------------------------------------------------------------
# Plain-JAX glue: TPS parameter solve (tiny 8x8 system) and bilinear sampling.
# ---------------------------------------------------------------------------
def _pair_square_euclidean(x1, x2):
    x1_sq = jnp.sum(x1 * x1, axis=-1, keepdims=True)
    x2_sq = jnp.sum(x2 * x2, axis=-1, keepdims=True).transpose(0, 2, 1)
    x1_x2 = jnp.matmul(x1, x2.transpose(0, 2, 1))
    return jnp.maximum(-2.0 * x1_x2 + x1_sq + x2_sq, 0.0)


def _kernel_distance(r_sq):
    return 0.5 * r_sq * jnp.log(r_sq + _EPS)


def get_tps_parameters(source_points, dest_points):
    # TODO(synk): torch.linalg.solve on an (N+3)x(N+3) system has no clean
    # Pallas equivalent; solved here with jnp.linalg.solve (tiny 8x8 per batch).
    dtype = source_points.dtype
    b, num_points = source_points.shape[:2]
    k_matrix = _kernel_distance(_pair_square_euclidean(source_points, dest_points))
    dest_with_zeros = jnp.concatenate(
        [dest_points, jnp.zeros((b, 3, 2), dtype)], axis=1)
    p_matrix = jnp.concatenate(
        [jnp.ones((b, num_points, 1), dtype), source_points], axis=-1)
    p_matrix_t = jnp.concatenate(
        [p_matrix, jnp.zeros((b, 3, 3), dtype)], axis=1).transpose(0, 2, 1)
    l_matrix = jnp.concatenate([k_matrix, p_matrix], axis=-1)
    l_matrix = jnp.concatenate([l_matrix, p_matrix_t], axis=1)
    weights = jnp.linalg.solve(l_matrix, dest_with_zeros)
    return weights[:, :-3], weights[:, -3:]


def grid_sample_bilinear_zeros_shared(img, gx, gy):
    """torch.nn.functional.grid_sample(img, grid, mode='bilinear',
    padding_mode='zeros', align_corners=False) with a batch-invariant grid.
    img: (B, C, H, W); gx, gy: (Ho, Wo) normalized coords in [-1, 1]."""
    # TODO(synk): the data-dependent 4-neighbor gather has no clean Pallas
    # equivalent on TPU; done with jnp.take. Index/weight math is computed
    # once and the index vector is shared across batch and channels.
    b, c, h, w = img.shape
    ho, wo = gx.shape
    ix = ((gx + 1.0) * w - 1.0) * 0.5
    iy = ((gy + 1.0) * h - 1.0) * 0.5
    ix0 = jnp.floor(ix)
    iy0 = jnp.floor(iy)
    ix1 = ix0 + 1.0
    iy1 = iy0 + 1.0
    wx1 = ix - ix0
    wx0 = 1.0 - wx1
    wy1 = iy - iy0
    wy0 = 1.0 - wy1

    img_flat = img.reshape(b, c, h * w)

    def corner(iy_, ix_, wgt):
        valid = (ix_ >= 0) & (ix_ <= w - 1) & (iy_ >= 0) & (iy_ <= h - 1)
        ixc = jnp.clip(ix_, 0, w - 1).astype(jnp.int32)
        iyc = jnp.clip(iy_, 0, h - 1).astype(jnp.int32)
        idx = (iyc * w + ixc).reshape(ho * wo)               # shared over B, C
        g = jnp.take(img_flat, idx, axis=2)                  # (B, C, Ho*Wo)
        wm = (wgt * valid.astype(img.dtype)).reshape(1, 1, ho * wo)
        return g * wm

    out = (corner(iy0, ix0, wy0 * wx0) + corner(iy0, ix1, wy0 * wx1)
           + corner(iy1, ix0, wy1 * wx0) + corner(iy1, ix1, wy1 * wx1))
    return out.reshape(b, c, ho, wo)


# ---------------------------------------------------------------------------
# TPSWarp forward
# ---------------------------------------------------------------------------
@jax.jit
def tps_warp_forward(img, key):
    _, _, h, w = img.shape
    dtype = jnp.float32

    # Control points buffer: stack((xs, ys), dim=1)[None] -> (1, 5, 2)
    xs = jnp.array([-1.0, 1.0, 0.0, -1.0, 1.0], dtype)
    ys = jnp.array([-1.0, -1.0, 0.0, 1.0, 1.0], dtype)
    points = jnp.stack([xs, ys], axis=1)[None]                      # (1, 5, 2)

    # dst = points + rand * 0.6 - 0.25
    rand = jax.random.uniform(key, points.shape, dtype=dtype)
    dst = points + rand * 0.6 - 0.25

    rbf_weights, affine_weights = get_tps_parameters(dst, points)   # (1,5,2),(1,3,2)

    # TPS weights have batch 1 and the sampling grid is identical per batch,
    # so the warped grid is computed exactly once by the Pallas kernel.
    gx, gy = tps_warp_grid_pallas(
        points[0], rbf_weights[0], affine_weights[0], h, w)          # (H, W) each

    return grid_sample_bilinear_zeros_shared(img, gx, gy)


if __name__ == "__main__":
    key = jax.random.PRNGKey(0)
    k_img, k_rand = jax.random.split(key)
    img = jax.random.normal(k_img, (2, 4, 16, 16), dtype=jnp.float32)

    out = tps_warp_forward(img, k_rand)
    jax.block_until_ready(out)

    assert out.shape == (2, 4, 16, 16), out.shape
    assert out.dtype == jnp.float32
    assert bool(jnp.all(jnp.isfinite(out)))
    print("KERNEL_OK")
</pallas_src>

<mosaic_0001>
module attributes {stable_mosaic.version = 11 : i64} {
  func.func @_tps_warp_grid_kernel(%arg0: i32, %arg1: i32, %arg2: memref<26xf32, #tpu.memory_space<smem>>, %arg3: memref<16x128xf32, #tpu.memory_space<vmem>>, %arg4: memref<16x128xf32, #tpu.memory_space<vmem>>) attributes {dimension_semantics = [#tpu.dimension_semantics<parallel>, #tpu.dimension_semantics<parallel>], iteration_bounds = array<i64: 1, 1>, scalar_prefetch = 0 : i64, scratch_operands = 0 : i64, tpu.core_type = #tpu.core_type<tc>, window_params = [{transform_indices = @transform_0, window_bounds = array<i64: 26>}, {transform_indices = @transform_1, window_bounds = array<i64: 16, 128>}, {transform_indices = @transform_2, window_bounds = array<i64: 16, 128>}]} {
    %0 = tpu.iota {dimensions = array<i32: 0>} : vector<16x128xi32>
    %1 = arith.sitofp %0 : vector<16x128xi32> to vector<16x128xf32>
    %2 = tpu.iota {dimensions = array<i32: 1>} : vector<16x128xi32>
    %3 = arith.sitofp %2 : vector<16x128xi32> to vector<16x128xf32>
    %c16_i32 = arith.constant 16 : i32
    %4 = arith.muli %arg0, %c16_i32 : i32
    %5 = arith.sitofp %4 : i32 to f32
    %6 = vector.broadcast %5 : f32 to vector<16x128xf32>
    %7 = arith.addf %1, %6 : vector<16x128xf32>
    %c128_i32 = arith.constant 128 : i32
    %8 = arith.muli %arg1, %c128_i32 : i32
    %9 = arith.sitofp %8 : i32 to f32
    %10 = vector.broadcast %9 : f32 to vector<16x128xf32>
    %11 = arith.addf %3, %10 : vector<16x128xf32>
    %cst = arith.constant 0.13333334 : f32
    %12 = vector.broadcast %cst : f32 to vector<16x128xf32>
    %13 = arith.mulf %7, %12 : vector<16x128xf32>
    %cst_0 = arith.constant 1.000000e+00 : f32
    %14 = vector.broadcast %cst_0 : f32 to vector<16x128xf32>
    %15 = arith.subf %13, %14 : vector<16x128xf32>
    %cst_1 = arith.constant 0.13333334 : f32
    %16 = vector.broadcast %cst_1 : f32 to vector<16x128xf32>
    %17 = arith.mulf %11, %16 : vector<16x128xf32>
    %cst_2 = arith.constant 1.000000e+00 : f32
    %18 = vector.broadcast %cst_2 : f32 to vector<16x128xf32>
    %19 = arith.subf %17, %18 : vector<16x128xf32>
    %c22 = arith.constant 22 : index
    %20 = memref.load %arg2[%c22] : memref<26xf32, #tpu.memory_space<smem>>
    %21 = vector.broadcast %20 : f32 to vector<16x128xf32>
    %22 = arith.mulf %19, %21 : vector<16x128xf32>
    %c24 = arith.constant 24 : index
    %23 = memref.load %arg2[%c24] : memref<26xf32, #tpu.memory_space<smem>>
    %24 = vector.broadcast %23 : f32 to vector<16x128xf32>
    %25 = arith.mulf %15, %24 : vector<16x128xf32>
    %c20 = arith.constant 20 : index
    %26 = memref.load %arg2[%c20] : memref<26xf32, #tpu.memory_space<smem>>
    %27 = vector.broadcast %26 : f32 to vector<16x128xf32>
    %28 = arith.addf %25, %27 : vector<16x128xf32>
    %29 = arith.addf %22, %28 : vector<16x128xf32>
    %c23 = arith.constant 23 : index
    %30 = memref.load %arg2[%c23] : memref<26xf32, #tpu.memory_space<smem>>
    %31 = vector.broadcast %30 : f32 to vector<16x128xf32>
    %32 = arith.mulf %19, %31 : vector<16x128xf32>
    %c25 = arith.constant 25 : index
    %33 = memref.load %arg2[%c25] : memref<26xf32, #tpu.memory_space<smem>>
    %34 = vector.broadcast %33 : f32 to vector<16x128xf32>
    %35 = arith.mulf %15, %34 : vector<16x128xf32>
    %c21 = arith.constant 21 : index
    %36 = memref.load %arg2[%c21] : memref<26xf32, #tpu.memory_space<smem>>
    %37 = vector.broadcast %36 : f32 to vector<16x128xf32>
    %38 = arith.addf %35, %37 : vector<16x128xf32>
    %39 = arith.addf %32, %38 : vector<16x128xf32>
    %c0 = arith.constant 0 : index
    %40 = memref.load %arg2[%c0] : memref<26xf32, #tpu.memory_space<smem>>
    %41 = vector.broadcast %40 : f32 to vector<16x128xf32>
    %42 = arith.subf %19, %41 : vector<16x128xf32>
    %c1 = arith.constant 1 : index
    %43 = memref.load %arg2[%c1] : memref<26xf32, #tpu.memory_space<smem>>
    %44 = vector.broadcast %43 : f32 to vector<16x128xf32>
    %45 = arith.subf %15, %44 : vector<16x128xf32>
    %46 = arith.mulf %42, %42 : vector<16x128xf32>
    %47 = arith.mulf %45, %45 : vector<16x128xf32>
    %48 = arith.addf %46, %47 : vector<16x128xf32>
    %cst_3 = arith.constant 5.000000e-01 : f32
    %49 = vector.broadcast %cst_3 : f32 to vector<16x128xf32>
    %50 = arith.mulf %49, %48 : vector<16x128xf32>
    %cst_4 = arith.constant 9.99999993E-9 : f32
    %51 = vector.broadcast %cst_4 : f32 to vector<16x128xf32>
    %52 = arith.addf %48, %51 : vector<16x128xf32>
    %53 = math.log %52 : vector<16x128xf32>
    %54 = arith.mulf %50, %53 : vector<16x128xf32>
    %c10 = arith.constant 10 : index
    %55 = memref.load %arg2[%c10] : memref<26xf32, #tpu.memory_space<smem>>
    %56 = vector.broadcast %55 : f32 to vector<16x128xf32>
    %57 = arith.mulf %54, %56 : vector<16x128xf32>
    %58 = arith.addf %29, %57 : vector<16x128xf32>
    %c11 = arith.constant 11 : index
    %59 = memref.load %arg2[%c11] : memref<26xf32, #tpu.memory_space<smem>>
    %60 = vector.broadcast %59 : f32 to vector<16x128xf32>
    %61 = arith.mulf %54, %60 : vector<16x128xf32>
    %62 = arith.addf %39, %61 : vector<16x128xf32>
    %c2 = arith.constant 2 : index
    %63 = memref.load %arg2[%c2] : memref<26xf32, #tpu.memory_space<smem>>
    %64 = vector.broadcast %63 : f32 to vector<16x128xf32>
    %65 = arith.subf %19, %64 : vector<16x128xf32>
    %c3 = arith.constant 3 : index
    %66 = memref.load %arg2[%c3] : memref<26xf32, #tpu.memory_space<smem>>
    %67 = vector.broadcast %66 : f32 to vector<16x128xf32>
    %68 = arith.subf %15, %67 : vector<16x128xf32>
    %69 = arith.mulf %65, %65 : vector<16x128xf32>
    %70 = arith.mulf %68, %68 : vector<16x128xf32>
    %71 = arith.addf %69, %70 : vector<16x128xf32>
    %cst_5 = arith.constant 5.000000e-01 : f32
    %72 = vector.broadcast %cst_5 : f32 to vector<16x128xf32>
    %73 = arith.mulf %72, %71 : vector<16x128xf32>
    %cst_6 = arith.constant 9.99999993E-9 : f32
    %74 = vector.broadcast %cst_6 : f32 to vector<16x128xf32>
    %75 = arith.addf %71, %74 : vector<16x128xf32>
    %76 = math.log %75 : vector<16x128xf32>
    %77 = arith.mulf %73, %76 : vector<16x128xf32>
    %c12 = arith.constant 12 : index
    %78 = memref.load %arg2[%c12] : memref<26xf32, #tpu.memory_space<smem>>
    %79 = vector.broadcast %78 : f32 to vector<16x128xf32>
    %80 = arith.mulf %77, %79 : vector<16x128xf32>
    %81 = arith.addf %58, %80 : vector<16x128xf32>
    %c13 = arith.constant 13 : index
    %82 = memref.load %arg2[%c13] : memref<26xf32, #tpu.memory_space<smem>>
    %83 = vector.broadcast %82 : f32 to vector<16x128xf32>
    %84 = arith.mulf %77, %83 : vector<16x128xf32>
    %85 = arith.addf %62, %84 : vector<16x128xf32>
    %c4 = arith.constant 4 : index
    %86 = memref.load %arg2[%c4] : memref<26xf32, #tpu.memory_space<smem>>
    %87 = vector.broadcast %86 : f32 to vector<16x128xf32>
    %88 = arith.subf %19, %87 : vector<16x128xf32>
    %c5 = arith.constant 5 : index
    %89 = memref.load %arg2[%c5] : memref<26xf32, #tpu.memory_space<smem>>
    %90 = vector.broadcast %89 : f32 to vector<16x128xf32>
    %91 = arith.subf %15, %90 : vector<16x128xf32>
    %92 = arith.mulf %88, %88 : vector<16x128xf32>
    %93 = arith.mulf %91, %91 : vector<16x128xf32>
    %94 = arith.addf %92, %93 : vector<16x128xf32>
    %cst_7 = arith.constant 5.000000e-01 : f32
    %95 = vector.broadcast %cst_7 : f32 to vector<16x128xf32>
    %96 = arith.mulf %95, %94 : vector<16x128xf32>
    %cst_8 = arith.constant 9.99999993E-9 : f32
    %97 = vector.broadcast %cst_8 : f32 to vector<16x128xf32>
    %98 = arith.addf %94, %97 : vector<16x128xf32>
    %99 = math.log %98 : vector<16x128xf32>
    %100 = arith.mulf %96, %99 : vector<16x128xf32>
    %c14 = arith.constant 14 : index
    %101 = memref.load %arg2[%c14] : memref<26xf32, #tpu.memory_space<smem>>
    %102 = vector.broadcast %101 : f32 to vector<16x128xf32>
    %103 = arith.mulf %100, %102 : vector<16x128xf32>
    %104 = arith.addf %81, %103 : vector<16x128xf32>
    %c15 = arith.constant 15 : index
    %105 = memref.load %arg2[%c15] : memref<26xf32, #tpu.memory_space<smem>>
    %106 = vector.broadcast %105 : f32 to vector<16x128xf32>
    %107 = arith.mulf %100, %106 : vector<16x128xf32>
    %108 = arith.addf %85, %107 : vector<16x128xf32>
    %c6 = arith.constant 6 : index
    %109 = memref.load %arg2[%c6] : memref<26xf32, #tpu.memory_space<smem>>
    %110 = vector.broadcast %109 : f32 to vector<16x128xf32>
    %111 = arith.subf %19, %110 : vector<16x128xf32>
    %c7 = arith.constant 7 : index
    %112 = memref.load %arg2[%c7] : memref<26xf32, #tpu.memory_space<smem>>
    %113 = vector.broadcast %112 : f32 to vector<16x128xf32>
    %114 = arith.subf %15, %113 : vector<16x128xf32>
    %115 = arith.mulf %111, %111 : vector<16x128xf32>
    %116 = arith.mulf %114, %114 : vector<16x128xf32>
    %117 = arith.addf %115, %116 : vector<16x128xf32>
    %cst_9 = arith.constant 5.000000e-01 : f32
    %118 = vector.broadcast %cst_9 : f32 to vector<16x128xf32>
    %119 = arith.mulf %118, %117 : vector<16x128xf32>
    %cst_10 = arith.constant 9.99999993E-9 : f32
    %120 = vector.broadcast %cst_10 : f32 to vector<16x128xf32>
    %121 = arith.addf %117, %120 : vector<16x128xf32>
    %122 = math.log %121 : vector<16x128xf32>
    %123 = arith.mulf %119, %122 : vector<16x128xf32>
    %c16 = arith.constant 16 : index
    %124 = memref.load %arg2[%c16] : memref<26xf32, #tpu.memory_space<smem>>
    %125 = vector.broadcast %124 : f32 to vector<16x128xf32>
    %126 = arith.mulf %123, %125 : vector<16x128xf32>
    %127 = arith.addf %104, %126 : vector<16x128xf32>
    %c17 = arith.constant 17 : index
    %128 = memref.load %arg2[%c17] : memref<26xf32, #tpu.memory_space<smem>>
    %129 = vector.broadcast %128 : f32 to vector<16x128xf32>
    %130 = arith.mulf %123, %129 : vector<16x128xf32>
    %131 = arith.addf %108, %130 : vector<16x128xf32>
    %c8 = arith.constant 8 : index
    %132 = memref.load %arg2[%c8] : memref<26xf32, #tpu.memory_space<smem>>
    %133 = vector.broadcast %132 : f32 to vector<16x128xf32>
    %134 = arith.subf %19, %133 : vector<16x128xf32>
    %c9 = arith.constant 9 : index
    %135 = memref.load %arg2[%c9] : memref<26xf32, #tpu.memory_space<smem>>
    %136 = vector.broadcast %135 : f32 to vector<16x128xf32>
    %137 = arith.subf %15, %136 : vector<16x128xf32>
    %138 = arith.mulf %134, %134 : vector<16x128xf32>
    %139 = arith.mulf %137, %137 : vector<16x128xf32>
    %140 = arith.addf %138, %139 : vector<16x128xf32>
    %cst_11 = arith.constant 5.000000e-01 : f32
    %141 = vector.broadcast %cst_11 : f32 to vector<16x128xf32>
    %142 = arith.mulf %141, %140 : vector<16x128xf32>
    %cst_12 = arith.constant 9.99999993E-9 : f32
    %143 = vector.broadcast %cst_12 : f32 to vector<16x128xf32>
    %144 = arith.addf %140, %143 : vector<16x128xf32>
    %145 = math.log %144 : vector<16x128xf32>
    %146 = arith.mulf %142, %145 : vector<16x128xf32>
    %c18 = arith.constant 18 : index
    %147 = memref.load %arg2[%c18] : memref<26xf32, #tpu.memory_space<smem>>
    %148 = vector.broadcast %147 : f32 to vector<16x128xf32>
    %149 = arith.mulf %146, %148 : vector<16x128xf32>
    %150 = arith.addf %127, %149 : vector<16x128xf32>
    %c19 = arith.constant 19 : index
    %151 = memref.load %arg2[%c19] : memref<26xf32, #tpu.memory_space<smem>>
    %152 = vector.broadcast %151 : f32 to vector<16x128xf32>
    %153 = arith.mulf %146, %152 : vector<16x128xf32>
    %154 = arith.addf %131, %153 : vector<16x128xf32>
    %c0_13 = arith.constant 0 : index
    %c0_14 = arith.constant 0 : index
    %155 = vector.load %arg3[%c0_13, %c0_14] : memref<16x128xf32, #tpu.memory_space<vmem>>, vector<16x128xf32>
    tpu.vector_store %arg3[%c0_13, %c0_14], %150 {strides = array<i32>} : memref<16x128xf32, #tpu.memory_space<vmem>>, vector<16x128xf32>,
    %c0_15 = arith.constant 0 : index
    %c0_16 = arith.constant 0 : index
    %156 = vector.load %arg4[%c0_15, %c0_16] : memref<16x128xf32, #tpu.memory_space<vmem>>, vector<16x128xf32>
    tpu.vector_store %arg4[%c0_15, %c0_16], %154 {strides = array<i32>} : memref<16x128xf32, #tpu.memory_space<vmem>>, vector<16x128xf32>,
    return
  }
  func.func @transform_0(%arg0: i32, %arg1: i32) -> i32 {
    %c0_i32 = arith.constant 0 : i32
    %c0_i32_0 = arith.constant 0 : i32
    return %c0_i32 : i32
  }
  func.func @transform_1(%arg0: i32, %arg1: i32) -> (i32, i32) {
    %c0_i32 = arith.constant 0 : i32
    return %arg0, %arg1 : i32, i32
  }
  func.func @transform_2(%arg0: i32, %arg1: i32) -> (i32, i32) {
    %c0_i32 = arith.constant 0 : i32
    return %arg0, %arg1 : i32, i32
  }
}

</mosaic_0001>

<llo_original>
// kernel: custom-call.8
$region0: #{custom-call.8}
  %s0 = inlined_call_operand.vmem [shape: f32[8,8], index: 0, kind: input, shape index: {}]
  %s1 = inlined_call_operand.vmem [shape: f32[8,8], index: 1, kind: output, shape index: {0}]
  %s2 = inlined_call_operand.hbm [shape: s32[8], index: 2, kind: output, shape index: {1}]
  %s3 = inlined_call_operand.vmem [shape: s32[8], index: 3, kind: output, shape index: {2}]
  %4 = xla_tuple %s1, %s2, %s3
  $region1: #{custom-call.8} parent=0
    #allocation0 [shape = 'u8[4096]{0}', space=vmem, size = 0x1000, scoped, tag = 'operand span for operand 0']
    #allocation1 [shape = 'u8[4096]{0}', space=vmem, size = 0x1000, scoped, tag = 'operand span for operand 1']
    #allocation2 [shape = 'u8[4096]{0}', space=vmem, size = 0x1000, scoped, tag = 'operand span for operand 2']
    #allocation3 [shape = 'u8[512]{0}', space=vmem, size = 0x400, scoped, tag = 'packed  for operand 2']
    #allocation4 [shape = 's32[1]{0}', space=sflag, size = 0x4, scoped, tag = 'scoped memory for custom-call.8']
    #allocation5 [shape = 'u8[4096]{0}', space=vmem, size = 0x1000, scoped, tag = 'operand span for operand 3']
    #allocation6 [shape = 'u8[512]{0}', space=vmem, size = 0x400, scoped, tag = 'packed  for operand 3']
    #allocation7 [shape = 's32[8,128]{1,0}', space=vmem, size = 0x1000, scoped, tag = 'scratch for permutations']
    %5 = vsyncpa [#allocation4], 0
    %p7 = scmp.gt.s32.totalorder 8, 0
    // Predicated region
    $region2: #{custom-call.8} parent=1 // pred_check
      %p8 = pneg %p7
    $region3: #{custom-call.8} parent=1 // pred_check_branch
      %10 = sbr.rel (%p8) target = $region5
    $region4: #{custom-call.8} parent=1 // pred_region
      %s11 = sshra.s32 8, 3
      %p12 = scmp.gt.s32.totalorder %s11, 0
      // Predicated region
      $region6: #{custom-call.8} parent=4 // pred_check
        %p13 = pneg %p12
      $region7: #{custom-call.8} parent=4 // pred_check_branch
        %15 = sbr.rel (%p13) target = $region9
      $region8: #{custom-call.8} parent=4 // pred_region
        %s16 = ssub.s32 %s11, 1
        %s17 = smul.u32 %s16, 128
        %s18 = sshra.s32 %s17, 4
        %s19 = scalar_lea.vmem %s0, %s18
        %v20 = vld [vmem:[%s0] sm:$0xff]
        // While loop
        $region10: #{custom-call.8} parent=8 // loop_pre_header
          _
        $region11: #{custom-call.8} parent=8 // loop_header
          %s21 = sphi %s0, %s43
          %s22 = sphi [#allocation0], %s44
          %v23 = vphi %v20, %v45
          %s24 = ssub.s32 %s19, 64
          %p25 = scmp.gt.s32.totalorder %s21, %s24
        $region12: #{custom-call.8} parent=8 // loop_header_branch
          %27 = sbr.rel (%p25) target = $region16
        $region13: #{custom-call.8} parent=8 // loop_body
          %28 = vst [vmem:[%s22] sm:$0xff] %v23
          %v29 = vld [vmem:[%s21 + $0x8] sm:$0xff]
          %30 = vst [vmem:[%s22 + $0x8] sm:$0xff] %v29
          %v31 = vld [vmem:[%s21 + $0x10] sm:$0xff]
          %32 = vst [vmem:[%s22 + $0x10] sm:$0xff] %v31
          %v33 = vld [vmem:[%s21 + $0x18] sm:$0xff]
          %34 = vst [vmem:[%s22 + $0x18] sm:$0xff] %v33
          %v35 = vld [vmem:[%s21 + $0x20] sm:$0xff]
          %36 = vst [vmem:[%s22 + $0x20] sm:$0xff] %v35
          %v37 = vld [vmem:[%s21 + $0x28] sm:$0xff]
          %38 = vst [vmem:[%s22 + $0x28] sm:$0xff] %v37
          %v39 = vld [vmem:[%s21 + $0x30] sm:$0xff]
          %40 = vst [vmem:[%s22 + $0x30] sm:$0xff] %v39
          %v41 = vld [vmem:[%s21 + $0x38] sm:$0xff]
          %42 = vst [vmem:[%s22 + $0x38] sm:$0xff] %v41
        $region14: #{custom-call.8} parent=8 // loop_footer
          %s43 = scalar_lea.vmem %s21, 64
          %s44 = scalar_lea.vmem %s22, 64
          %v45 = vld [vmem:[%s21 + $0x40] sm:$0xff]
        $region15: #{custom-call.8} parent=8 // loop_footer_branch
          %46 = sbr.rel target = $region11
        $region16: #{custom-call.8} parent=8 // loop_exit
          _
        // While loop
        $region17: #{custom-call.8} parent=8 // loop_pre_header
          _
        $region18: #{custom-call.8} parent=8 // loop_header
          %s47 = sphi %s21, %s55
          %s48 = sphi %s22, %s56
          %v49 = vphi %v23, %v49
          %p50 = scmp.gt.s32.totalorder %s47, %s19
        $region19: #{custom-call.8} parent=8 // loop_header_branch
          %52 = sbr.rel (%p50) target = $region23
        $region20: #{custom-call.8} parent=8 // loop_body
          %v53 = vld [vmem:[%s47] sm:$0xff]
          %54 = vst [vmem:[%s48] sm:$0xff] %v53
        $region21: #{custom-call.8} parent=8 // loop_footer
          %s55 = scalar_lea.vmem %s47, 8
          %s56 = scalar_lea.vmem %s48, 8
        $region22: #{custom-call.8} parent=8 // loop_footer_branch
          %57 = sbr.rel target = $region18
        $region23: #{custom-call.8} parent=8 // loop_exit
          _
      $region9: #{custom-call.8} parent=4 // pred_fallthru
        _
      %s58 = sand.u32 8, 7
      %s59 = sshllo.u32 0, %s58
      %s60 = smul.u32 %s11, 128
      %s61 = sshra.s32 %s60, 4
      %s62 = scalar_lea.vmem [#allocation0], %s61
      %s63 = smul.u32 %s11, 128
      %s64 = sshra.s32 %s63, 4
      %s65 = scalar_lea.vmem %s0, %s64
      %v66 = vld [vmem:[%s65] sm:%s59]
      %67 = vst [vmem:[%s62] sm:%s59] %v66
    $region5: #{custom-call.8} parent=1 // pred_fallthru
      _
    %v68 = vld [vmem:[#allocation0] sm:$0xff]
    %69 = vst [vmem:[#allocation1] sm:$0xff] %v68
    %70 = vst [vmem:[#allocation2] sm:$0x1] 0
    %v71 = vlaneseq
    %v72 = vshrl.u32 %v71, 7
    %v73 = vmov %v72
    %75 = vst [vmem:[#allocation7] sm:$0xff] %v73
    loop: start=0, step=1, limit=8
    $region25: #{custom-call.8} parent=1 // loop_pre_header
      _
    $region26: #{custom-call.8} parent=1 // loop_header
      %s77 = sphi 0, %s81
      %p78 = scmp.ge.s32.totalorder %s77, 8
    $region27: #{custom-call.8} parent=1 // loop_header_branch
      %80 = sbr.rel (%p78) target = $region31
    $region28: #{custom-call.8} parent=1 // loop_body
      %v82 = vstv %s77
      %v83 = vlaneseq
      %v84 = vshrl.u32 %v83, 7
      %v85 = vmov %v84
      %v86 = vld [vmem:[#allocation1] sm:$0xff]
      %v87 = vand.u32 2147483647, %v86
      %v89 = vstv %s77
      %vm90 = vcmp.ge.s32.totalorder %v85, %v89
      %vm91 = vcmp.lt.s32.totalorder %v85, 8
      %vm92 = vmand %vm90, %vm91
      %vm93 = vcmp.lt.f32.partialorder -inf, %v87
      %vm94 = vmand %vm92, %vm93
      %v95 = vsel %vm94, %v85, %v82
      %v96 = vsel %vm94, %v87, -inf
      %v97 = vrot.slane %v96, 1
      %v98 = vrot.slane %v95, 1
      %vm99 = vcmp.ge.f32.partialorder %v97, %v96
      %v100 = vsel %vm99, %v97, %v96
      %v101 = vsel %vm99, %v98, %v95
      %v102 = vrot.slane %v97, 1
      %v103 = vrot.slane %v98, 1
      %vm104 = vcmp.ge.f32.partialorder %v102, %v100
      %v105 = vsel %vm104, %v102, %v100
      %v106 = vsel %vm104, %v103, %v101
      %v107 = vrot.slane %v102, 1
      %v108 = vrot.slane %v103, 1
      %vm109 = vcmp.ge.f32.partialorder %v107, %v105
      %v110 = vsel %vm109, %v107, %v105
      %v111 = vsel %vm109, %v108, %v106
      %v112 = vrot.slane %v107, 1
      %v113 = vrot.slane %v108, 1
      %vm114 = vcmp.ge.f32.partialorder %v112, %v110
      %v115 = vsel %vm114, %v112, %v110
      %v116 = vsel %vm114, %v113, %v111
      %v117 = vrot.slane %v112, 1
      %v118 = vrot.slane %v113, 1
      %vm119 = vcmp.ge.f32.partialorder %v117, %v115
      %v120 = vsel %vm119, %v117, %v115
      %v121 = vsel %vm119, %v118, %v116
      %v122 = vrot.slane %v117, 1
      %v123 = vrot.slane %v118, 1
      %vm124 = vcmp.ge.f32.partialorder %v122, %v120
      %v125 = vsel %vm124, %v122, %v120
      %v126 = vsel %vm124, %v123, %v121
      %v127 = vrot.slane %v122, 1
      %v128 = vrot.slane %v123, 1
      %vm129 = vcmp.ge.f32.partialorder %v127, %v125
      %v130 = vsel %vm129, %v127, %v125
      %v131 = vsel %vm129, %v128, %v126
      %s132 = ssub.s32 128, %s77
      %133 = vrot.lane.b32.xlu0 %v131, %s132
      %v134 = vpop.permute.xlu0 %133
      %s135 = vtos %v134
      %v136 = vstv %s77
      %v137 = vlaneseq
      %v138 = vand.u32 %v137, 127
      %vm139 = vcmp.eq.s32.totalorder %v138, %v136
      %v140 = vstv %s135
      %v141 = vld [vmem:[#allocation2] ss:$0 sm:$0xff]
      %v142 = vsel %vm139, %v140, %v141
      %143 = vst [vmem:[#allocation2] sm:$0x1] %v142
      %s144 = scalar_lea.vmem [#allocation1], %s77
      %s145 = scalar_lea.vmem [#allocation1], %s135
      %v146 = vld [vmem:[%s144] ss:$0 sm:$0xff]
      %v147 = vld [vmem:[%s145] ss:$0 sm:$0xff]
      %148 = vst [vmem:[%s145] sm:$0x1] %v146
      %149 = vst [vmem:[%s144] sm:$0x1] %v147
      %s150 = scalar_lea.vmem [#allocation7], %s77
      %s151 = scalar_lea.vmem [#allocation7], %s135
      %v152 = vld [vmem:[%s150] ss:$0 sm:$0xff]
      %v153 = vld [vmem:[%s151] ss:$0 sm:$0xff]
      %154 = vst [vmem:[%s151] sm:$0x1] %v152
      %155 = vst [vmem:[%s150] sm:$0x1] %v153
      %vm156 = vcmp.ne.f32.partialorder %v147, 0.0
      %vm157 = vmand %vm139, %vm156
      %v158 = vsel %vm157, %v147, 1.0
      %v159 = vlaneseq
      %v160 = vand.u32 %v159, 127
      %v161 = vstv %s77
      %vm162 = vcmp.gt.s32.totalorder %v160, %v161
      %v163 = vsel %vm162, %v147, 0.0
      %v164 = vlaneseq
      %v165 = vshrl.u32 %v164, 7
      %v166 = vmov %v165
      %v167 = vld [vmem:[#allocation1] sm:$0xff]
      %v169 = vstv %s77
      %vm170 = vcmp.gt.s32.totalorder %v166, %v169
      %v171 = vsel %vm170, %v158, 1.0
      %v172 = vrcp.pop %v171
      %v173 = vmul.f32 %v167, %v172
      %vm174 = vmand %vm170, %vm139
      %v175 = vsel %vm174, %v173, 0.0
      %176 = vadd.xlane.f32.xlu0 %v175
      %v177 = vpop.xlane.xlu0 %176
      %v178 = vmul.f32 %v177, %v163
      %v179 = vsub.f32 %v173, %v178
      %180 = vst [vmem:[#allocation1] sm:$0xff] %v179
    $region29: #{custom-call.8} parent=1 // loop_footer
      %s81 = sadd.s32 1, %s77
    $region30: #{custom-call.8} parent=1 // loop_footer_branch
      %76 = sbr.rel target = $region26
    $region31: #{custom-call.8} parent=1 // loop_exit
      _
    %v181 = vld [vmem:[#allocation7] sm:$0xff]
    %s182 = scalar_lea.vmem [#allocation7], 8
    %s183 = scalar_lea.vmem [#allocation7], 16
    %s184 = scalar_lea.vmem [#allocation7], 24
    %s185 = scalar_lea.vmem [#allocation7], 32
    %s186 = scalar_lea.vmem [#allocation7], 40
    %s187 = scalar_lea.vmem [#allocation7], 48
    %s188 = scalar_lea.vmem [#allocation7], 56
    %s189 = scalar_lea.vmem [#allocation7], 64
    %s190 = scalar_lea.vmem [#allocation7], 72
    %s191 = scalar_lea.vmem [#allocation7], 80
    %s192 = scalar_lea.vmem [#allocation7], 88
    %s193 = scalar_lea.vmem [#allocation7], 96
    %s194 = scalar_lea.vmem [#allocation7], 104
    %s195 = scalar_lea.vmem [#allocation7], 112
    %s196 = scalar_lea.vmem [#allocation7], 120
    %197 = vxpose.xlu0.b32.start [1/16] %v181, 128
    %198 = vxpose.xlu0.b32.cont [2/16] 0, 128
    %199 = vxpose.xlu0.b32.cont [3/16] 0, 128
    %200 = vxpose.xlu0.b32.cont [4/16] 0, 128
    %201 = vxpose.xlu0.b32.cont [5/16] 0, 128
    %202 = vxpose.xlu0.b32.cont [6/16] 0, 128
    %203 = vxpose.xlu0.b32.cont [7/16] 0, 128
    %204 = vxpose.xlu0.b32.cont [8/16] 0, 128
    %205 = vxpose.xlu0.b32.cont [9/16] 0, 128
    %206 = vxpose.xlu0.b32.cont [10/16] 0, 128
    %207 = vxpose.xlu0.b32.cont [11/16] 0, 128
    %208 = vxpose.xlu0.b32.cont [12/16] 0, 128
    %209 = vxpose.xlu0.b32.cont [13/16] 0, 128
    %210 = vxpose.xlu0.b32.cont [14/16] 0, 128
    %211 = vxpose.xlu0.b32.cont [15/16] 0, 128
    %212 = vxpose.xlu0.b32.end [16/16] 0, 128
    %v213 = vpop.trf.xlu0
    %v214 = vpop.trf.xlu0
    %v215 = vpop.trf.xlu0
    %v216 = vpop.trf.xlu0
    %v217 = vpop.trf.xlu0
    %v218 = vpop.trf.xlu0
    %v219 = vpop.trf.xlu0
    %v220 = vpop.trf.xlu0
    %v221 = vpop.trf.xlu0
    %v222 = vpop.trf.xlu0
    %v223 = vpop.trf.xlu0
    %v224 = vpop.trf.xlu0
    %v225 = vpop.trf.xlu0
    %v226 = vpop.trf.xlu0
    %v227 = vpop.trf.xlu0
    %v228 = vpop.trf.xlu0
    %229 = vst [vmem:[#allocation5] sm:$0x1] %v213
    %s231 = sshllo.u32 0, 1
    %v233 = vld [vmem:[#allocation2] sm:%s231]
    %s234 = sshllo.u32 0, 1
    %235 = vst [vmem:[#allocation3] sm:%s234] %v233
    %s237 = sshllo.u32 0, 1
    %v239 = vld [vmem:[#allocation5] sm:%s237]
    %s240 = sshllo.u32 0, 1
    %241 = vst [vmem:[#allocation6] sm:%s240] %v239
    %p243 = scmp.gt.s32.totalorder 8, 0
    // Predicated region
    $region32: #{custom-call.8} parent=1 // pred_check
      %p244 = pneg %p243
    $region33: #{custom-call.8} parent=1 // pred_check_branch
      %246 = sbr.rel (%p244) target = $region35
    $region34: #{custom-call.8} parent=1 // pred_region
      %s247 = sshra.s32 8, 3
      %p248 = scmp.gt.s32.totalorder %s247, 0
      // Predicated region
      $region36: #{custom-call.8} parent=34 // pred_check
        %p249 = pneg %p248
      $region37: #{custom-call.8} parent=34 // pred_check_branch
        %251 = sbr.rel (%p249) target = $region39
      $region38: #{custom-call.8} parent=34 // pred_region
        %s252 = ssub.s32 %s247, 1
        %s253 = smul.u32 %s252, 128
        %s254 = sshra.s32 %s253, 4
        %s255 = scalar_lea.vmem [#allocation1], %s254
        %v256 = vld [vmem:[#allocation1] sm:$0xff]
        // While loop
        $region40: #{custom-call.8} parent=38 // loop_pre_header
          _
        $region41: #{custom-call.8} parent=38 // loop_header
          %s257 = sphi [#allocation1], %s279
          %s258 = sphi %s1, %s280
          %v259 = vphi %v256, %v281
          %s260 = ssub.s32 %s255, 64
          %p261 = scmp.gt.s32.totalorder %s257, %s260
        $region42: #{custom-call.8} parent=38 // loop_header_branch
          %263 = sbr.rel (%p261) target = $region46
        $region43: #{custom-call.8} parent=38 // loop_body
          %264 = vst [vmem:[%s258] sm:$0xff] %v259
          %v265 = vld [vmem:[%s257 + $0x8] sm:$0xff]
          %266 = vst [vmem:[%s258 + $0x8] sm:$0xff] %v265
          %v267 = vld [vmem:[%s257 + $0x10] sm:$0xff]
          %268 = vst [vmem:[%s258 + $0x10] sm:$0xff] %v267
          %v269 = vld [vmem:[%s257 + $0x18] sm:$0xff]
          %270 = vst [vmem:[%s258 + $0x18] sm:$0xff] %v269
          %v271 = vld [vmem:[%s257 + $0x20] sm:$0xff]
          %272 = vst [vmem:[%s258 + $0x20] sm:$0xff] %v271
          %v273 = vld [vmem:[%s257 + $0x28] sm:$0xff]
          %274 = vst [vmem:[%s258 + $0x28] sm:$0xff] %v273
          %v275 = vld [vmem:[%s257 + $0x30] sm:$0xff]
          %276 = vst [vmem:[%s258 + $0x30] sm:$0xff] %v275
          %v277 = vld [vmem:[%s257 + $0x38] sm:$0xff]
          %278 = vst [vmem:[%s258 + $0x38] sm:$0xff] %v277
        $region44: #{custom-call.8} parent=38 // loop_footer
          %s279 = scalar_lea.vmem %s257, 64
          %s280 = scalar_lea.vmem %s258, 64
          %v281 = vld [vmem:[%s257 + $0x40] sm:$0xff]
        $region45: #{custom-call.8} parent=38 // loop_footer_branch
          %282 = sbr.rel target = $region41
        $region46: #{custom-call.8} parent=38 // loop_exit
          _
        // While loop
        $region47: #{custom-call.8} parent=38 // loop_pre_header
          _
        $region48: #{custom-call.8} parent=38 // loop_header
          %s283 = sphi %s257, %s291
          %s284 = sphi %s258, %s292
          %v285 = vphi %v259, %v285
          %p286 = scmp.gt.s32.totalorder %s283, %s255
        $region49: #{custom-call.8} parent=38 // loop_header_branch
          %288 = sbr.rel (%p286) target = $region53
        $region50: #{custom-call.8} parent=38 // loop_body
          %v289 = vld [vmem:[%s283] sm:$0xff]
          %290 = vst [vmem:[%s284] sm:$0xff] %v289
        $region51: #{custom-call.8} parent=38 // loop_footer
          %s291 = scalar_lea.vmem %s283, 8
          %s292 = scalar_lea.vmem %s284, 8
        $region52: #{custom-call.8} parent=38 // loop_footer_branch
          %293 = sbr.rel target = $region48
        $region53: #{custom-call.8} parent=38 // loop_exit
          _
      $region39: #{custom-call.8} parent=34 // pred_fallthru
        _
      %s294 = sand.u32 8, 7
      %s295 = sshllo.u32 0, %s294
      %s296 = smul.u32 %s247, 128
      %s297 = sshra.s32 %s296, 4
      %s298 = scalar_lea.vmem %s1, %s297
      %s299 = smul.u32 %s247, 128
      %s300 = sshra.s32 %s299, 4
      %s301 = scalar_lea.vmem [#allocation1], %s300
      %v302 = vld [vmem:[%s301] sm:%s295]
      %303 = vst [vmem:[%s298] sm:%s295] %v302
    $region35: #{custom-call.8} parent=1 // pred_fallthru
      _
    // Predicated region
    $region54: #{custom-call.8} parent=1 // pred_check
      _
    $region55: #{custom-call.8} parent=1 // pred_check_branch
      %305 = sbr.rel (0) target = $region57
    $region56: #{custom-call.8} parent=1 // pred_region
      %s307 = ssub.s32 16, 16
      %308 = vsyncadd [#allocation4], %s307
      %s309 = sshll.u32 [#allocation3], 4
      %s310 = int_to_ptr.vmem [resolvable:$true] %s309
      %312 = dma.vmem_to_hbm [thread:$0]  %s310, 16, %s2, [#allocation4]
    $region57: #{custom-call.8} parent=1 // pred_fallthru
      _
    // Predicated region
    $region58: #{custom-call.8} parent=1 // pred_check
      _
    $region59: #{custom-call.8} parent=1 // pred_check_branch
      %314 = sbr.rel (0) target = $region61
    $region60: #{custom-call.8} parent=1 // pred_region
      %p316 = scmp.gt.s32.totalorder 1, 0
      // Predicated region
      $region62: #{custom-call.8} parent=60 // pred_check
        %p317 = pneg %p316
      $region63: #{custom-call.8} parent=60 // pred_check_branch
        %319 = sbr.rel (%p317) target = $region65
      $region64: #{custom-call.8} parent=60 // pred_region
        %s320 = sshra.s32 1, 3
        %p321 = scmp.gt.s32.totalorder %s320, 0
        // Predicated region
        $region66: #{custom-call.8} parent=64 // pred_check
          %p322 = pneg %p321
        $region67: #{custom-call.8} parent=64 // pred_check_branch
          %324 = sbr.rel (%p322) target = $region69
        $region68: #{custom-call.8} parent=64 // pred_region
          %s325 = ssub.s32 %s320, 1
          %s326 = smul.u32 %s325, 128
          %s327 = sshra.s32 %s326, 4
          %s328 = scalar_lea.vmem [#allocation6], %s327
          %v329 = vld [vmem:[#allocation6] sm:$0xff]
          // While loop
          $region70: #{custom-call.8} parent=68 // loop_pre_header
            _
          $region71: #{custom-call.8} parent=68 // loop_header
            %s330 = sphi [#allocation6], %s352
            %s331 = sphi %s3, %s353
            %v332 = vphi %v329, %v354
            %s333 = ssub.s32 %s328, 64
            %p334 = scmp.gt.s32.totalorder %s330, %s333
          $region72: #{custom-call.8} parent=68 // loop_header_branch
            %336 = sbr.rel (%p334) target = $region76
          $region73: #{custom-call.8} parent=68 // loop_body
            %337 = vst [vmem:[%s331] sm:$0xff] %v332
            %v338 = vld [vmem:[%s330 + $0x8] sm:$0xff]
            %339 = vst [vmem:[%s331 + $0x8] sm:$0xff] %v338
            %v340 = vld [vmem:[%s330 + $0x10] sm:$0xff]
            %341 = vst [vmem:[%s331 + $0x10] sm:$0xff] %v340
            %v342 = vld [vmem:[%s330 + $0x18] sm:$0xff]
            %343 = vst [vmem:[%s331 + $0x18] sm:$0xff] %v342
            %v344 = vld [vmem:[%s330 + $0x20] sm:$0xff]
            %345 = vst [vmem:[%s331 + $0x20] sm:$0xff] %v344
            %v346 = vld [vmem:[%s330 + $0x28] sm:$0xff]
            %347 = vst [vmem:[%s331 + $0x28] sm:$0xff] %v346
            %v348 = vld [vmem:[%s330 + $0x30] sm:$0xff]
            %349 = vst [vmem:[%s331 + $0x30] sm:$0xff] %v348
            %v350 = vld [vmem:[%s330 + $0x38] sm:$0xff]
            %351 = vst [vmem:[%s331 + $0x38] sm:$0xff] %v350
          $region74: #{custom-call.8} parent=68 // loop_footer
            %s352 = scalar_lea.vmem %s330, 64
            %s353 = scalar_lea.vmem %s331, 64
            %v354 = vld [vmem:[%s330 + $0x40] sm:$0xff]
          $region75: #{custom-call.8} parent=68 // loop_footer_branch
            %355 = sbr.rel target = $region71
          $region76: #{custom-call.8} parent=68 // loop_exit
            _
          // While loop
          $region77: #{custom-call.8} parent=68 // loop_pre_header
            _
          $region78: #{custom-call.8} parent=68 // loop_header
            %s356 = sphi %s330, %s364
            %s357 = sphi %s331, %s365
            %v358 = vphi %v332, %v358
            %p359 = scmp.gt.s32.totalorder %s356, %s328
          $region79: #{custom-call.8} parent=68 // loop_header_branch
            %361 = sbr.rel (%p359) target = $region83
          $region80: #{custom-call.8} parent=68 // loop_body
            %v362 = vld [vmem:[%s356] sm:$0xff]
            %363 = vst [vmem:[%s357] sm:$0xff] %v362
          $region81: #{custom-call.8} parent=68 // loop_footer
            %s364 = scalar_lea.vmem %s356, 8
            %s365 = scalar_lea.vmem %s357, 8
          $region82: #{custom-call.8} parent=68 // loop_footer_branch
            %366 = sbr.rel target = $region78
          $region83: #{custom-call.8} parent=68 // loop_exit
            _
        $region69: #{custom-call.8} parent=64 // pred_fallthru
          _
        %s367 = sand.u32 1, 7
        %s368 = sshllo.u32 0, %s367
        %s369 = smul.u32 %s320, 128
        %s370 = sshra.s32 %s369, 4
        %s371 = scalar_lea.vmem %s3, %s370
        %s372 = smul.u32 %s320, 128
        %s373 = sshra.s32 %s372, 4
        %s374 = scalar_lea.vmem [#allocation6], %s373
        %v375 = vld [vmem:[%s374] sm:%s368]
        %376 = vst [vmem:[%s371] sm:%s368] %v375
      $region65: #{custom-call.8} parent=60 // pred_fallthru
        _
    $region61: #{custom-call.8} parent=1 // pred_fallthru
      _
    // Predicated region
    $region84: #{custom-call.8} parent=1 // pred_check
      _
    $region85: #{custom-call.8} parent=1 // pred_check_branch
      %378 = sbr.rel (0) target = $region87
    $region86: #{custom-call.8} parent=1 // pred_region
      %379 = dma.done [#allocation4], 16
    $region87: #{custom-call.8} parent=1 // pred_fallthru
      _
    // Predicated region
    $region88: #{custom-call.8} parent=1 // pred_check
      _
    $region89: #{custom-call.8} parent=1 // pred_check_branch
      %381 = sbr.rel (0) target = $region91
    $region90: #{custom-call.8} parent=1 // pred_region
      _
    $region91: #{custom-call.8} parent=1 // pred_fallthru
      _
    %382 = vsyncpa [#allocation4], 1

// kernel: custom-call.9
$region0: #{custom-call.9}
  %s0 = inlined_call_operand.vmem [shape: f32[1,8,8], index: 0, kind: input, shape index: {}]
  %s1 = inlined_call_operand.vmem [shape: f32[1,8,8], index: 1, kind: output, shape index: {}]
  $region1: #{custom-call.9} parent=0
    #allocation0 [shape = 'u8[4096]{0}', space=vmem, size = 0x1000, scoped, tag = 'operand span for operand 0']
    #allocation1 [shape = 'u8[4096]{0}', space=vmem, size = 0x1000, scoped, tag = 'operand span for operand 1']
    #allocation2 [shape = 'f32[8,8]{1,0}', space=vmem, size = 0x1000, scoped, tag = 'rescaled input a']
    // Predicated region
    $region2: #{custom-call.9} parent=1 // pred_check
      _
    $region3: #{custom-call.9} parent=1 // pred_check_branch
      %3 = sbr.rel (0) target = $region5
    $region4: #{custom-call.9} parent=1 // pred_region
      // Predicated region
      $region6: #{custom-call.9} parent=4 // pred_check
        _
      $region7: #{custom-call.9} parent=4 // pred_check_branch
        %5 = sbr.rel (0) target = $region9
      $region8: #{custom-call.9} parent=4 // pred_region
        // Predicated region
        $region21: #{custom-call.9} parent=8 // pred_check
          _
        $region22: #{custom-call.9} parent=8 // pred_check_branch
          %20 = sbr.rel (0) target = $region24
        $region23: #{custom-call.9} parent=8 // pred_region
          loop: start=0, step=1, limit=1
          $region25: #{custom-call.9} parent=23 // loop_pre_header
            _
          $region26: #{custom-call.9} parent=23 // loop_header
            %s22 = sphi 0, %s26
            %p23 = scmp.ge.s32.totalorder %s22, 1
            %s27 = sphi %s0, %s0
            %s28 = sphi [#allocation0], [#allocation0]
          $region27: #{custom-call.9} parent=23 // loop_header_branch
            %25 = sbr.rel (%p23) target = $region31
          $region28: #{custom-call.9} parent=23 // loop_body
            %v29 = vld [vmem:[%s27] sm:$0xff]
            %30 = vst [vmem:[%s28] sm:$0xff] %v29
          $region29: #{custom-call.9} parent=23 // loop_footer
            %s26 = sadd.s32 1, %s22
          $region30: #{custom-call.9} parent=23 // loop_footer_branch
            %21 = sbr.rel target = $region26
          $region31: #{custom-call.9} parent=23 // loop_exit
            _
        $region24: #{custom-call.9} parent=8 // pred_fallthru
          _
        // Predicated region
        $region32: #{custom-call.9} parent=8 // pred_check
          _
        $region33: #{custom-call.9} parent=8 // pred_check_branch
          %32 = sbr.rel target = $region35
        $region34: #{custom-call.9} parent=8 // pred_region
          _
        $region35: #{custom-call.9} parent=8 // pred_fallthru
          _
      $region9: #{custom-call.9} parent=4 // pred_fallthru
        _
      // Predicated region
      $region10: #{custom-call.9} parent=4 // pred_check
        _
      $region11: #{custom-call.9} parent=4 // pred_check_branch
        %7 = sbr.rel target = $region13
      $region12: #{custom-call.9} parent=4 // pred_region
        loop: start=0, step=1, limit=1
        $region14: #{custom-call.9} parent=12 // loop_pre_header
          _
        $region15: #{custom-call.9} parent=12 // loop_header
          %s10 = sphi 0, %s14
          %p11 = scmp.ge.s32.totalorder %s10, 1
          %s15 = sphi %s0, %s0
          %s16 = sphi [#allocation0], [#allocation0]
        $region16: #{custom-call.9} parent=12 // loop_header_branch
          %13 = sbr.rel (%p11) target = $region20
        $region17: #{custom-call.9} parent=12 // loop_body
          %v17 = vld [vmem:[%s15] sm:$0xff]
          %18 = vst [vmem:[%s16] sm:$0xff] %v17
        $region18: #{custom-call.9} parent=12 // loop_footer
          %s14 = sadd.s32 1, %s10
        $region19: #{custom-call.9} parent=12 // loop_footer_branch
          %9 = sbr.rel target = $region15
        $region20: #{custom-call.9} parent=12 // loop_exit
          _
      $region13: #{custom-call.9} parent=4 // pred_fallthru
        _
    $region5: #{custom-call.9} parent=1 // pred_fallthru
      _
    %33 = vnop
    %v34 = vlaneseq
    %v35 = vand.u32 %v34, 127
    %vm36 = vcmp.lt.s32.totalorder %v35, 8
    %v37 = vlaneseq
    %v38 = vshrl.u32 %v37, 7
    %vm40 = vcmp.eq.s32.totalorder %v38, %v35
    %v41 = vld [vmem:[#allocation0] sm:$0xff]
    %v42 = vsel %vm40, %v41, 0.0
    %43 = vadd.xlane.f32.xlu0 %v42
    %v44 = vpop.xlane.xlu0 %43
    %vm45 = vcmp.le.s32.totalorder %v38, %v35
    %vm46 = vmand %vm45, %vm36
    %v47 = vsel %vm46, %v41, 0.0
    %v48 = vrcp.pop %v44
    %v49 = vmul.f32 %v47, %v48
    %50 = vst [vmem:[#allocation2] sm:$0xff] %v49
    %v51 = vlaneseq
    %v52 = vand.u32 %v51, 127
    %v53 = vlaneseq
    %v54 = vshrl.u32 %v53, 7
    %vm56 = vcmp.eq.s32.totalorder %v52, %v54
    %v57 = vlaneseq
    %v58 = vand.u32 %v57, 127
    %vm59 = vcmp.eq.s32.totalorder %v58, 7
    %v60 = vsel %vm59, 1.0, -1.0
    %v61 = vsel %vm56, %v60, 0.0
    %s62 = scalar_lea.vmem [#allocation2], 6
    %v63 = vld [vmem:[%s62] ss:$0 sm:$0xff]
    %v64 = vxor.u32 %v63, 2147483648
    %v65 = vlaneseq
    %v66 = vand.u32 %v65, 127
    %vm67 = vcmp.eq.s32.totalorder %v66, 6
    %v68 = vmul.f32 %v64, %v61
    %69 = vadd.xlane.f32.xlu0 %v68
    %v70 = vpop.xlane.xlu0 %69
    %v71 = vsel %vm67, %v70, %v61
    %s72 = scalar_lea.vmem [#allocation2], 5
    %v73 = vld [vmem:[%s72] ss:$0 sm:$0xff]
    %v74 = vxor.u32 %v73, 2147483648
    %v75 = vlaneseq
    %v76 = vand.u32 %v75, 127
    %vm77 = vcmp.eq.s32.totalorder %v76, 5
    %v78 = vmul.f32 %v74, %v71
    %79 = vadd.xlane.f32.xlu0 %v78
    %v80 = vpop.xlane.xlu0 %79
    %v81 = vsel %vm77, %v80, %v71
    %s82 = scalar_lea.vmem [#allocation2], 4
    %v83 = vld [vmem:[%s82] ss:$0 sm:$0xff]
    %v84 = vxor.u32 %v83, 2147483648
    %v85 = vlaneseq
    %v86 = vand.u32 %v85, 127
    %vm87 = vcmp.eq.s32.totalorder %v86, 4
    %v88 = vmul.f32 %v84, %v81
    %89 = vadd.xlane.f32.xlu0 %v88
    %v90 = vpop.xlane.xlu0 %89
    %v91 = vsel %vm87, %v90, %v81
    %s92 = scalar_lea.vmem [#allocation2], 3
    %v93 = vld [vmem:[%s92] ss:$0 sm:$0xff]
    %v94 = vxor.u32 %v93, 2147483648
    %v95 = vlaneseq
    %v96 = vand.u32 %v95, 127
    %vm97 = vcmp.eq.s32.totalorder %v96, 3
    %v98 = vmul.f32 %v94, %v91
    %99 = vadd.xlane.f32.xlu0 %v98
    %v100 = vpop.xlane.xlu0 %99
    %v101 = vsel %vm97, %v100, %v91
    %s102 = scalar_lea.vmem [#allocation2], 2
    %v103 = vld [vmem:[%s102] ss:$0 sm:$0xff]
    %v104 = vxor.u32 %v103, 2147483648
    %v105 = vlaneseq
    %v106 = vand.u32 %v105, 127
    %vm107 = vcmp.eq.s32.totalorder %v106, 2
    %v108 = vmul.f32 %v104, %v101
    %109 = vadd.xlane.f32.xlu0 %v108
    %v110 = vpop.xlane.xlu0 %109
    %v111 = vsel %vm107, %v110, %v101
    %s112 = scalar_lea.vmem [#allocation2], 1
    %v113 = vld [vmem:[%s112] ss:$0 sm:$0xff]
    %v114 = vxor.u32 %v113, 2147483648
    %v115 = vlaneseq
    %v116 = vand.u32 %v115, 127
    %vm117 = vcmp.eq.s32.totalorder %v116, 1
    %v118 = vmul.f32 %v114, %v111
    %119 = vadd.xlane.f32.xlu0 %v118
    %v120 = vpop.xlane.xlu0 %119
    %v121 = vsel %vm117, %v120, %v111
    %v122 = vld [vmem:[#allocation2] ss:$0 sm:$0xff]
    %v123 = vxor.u32 %v122, 2147483648
    %v124 = vlaneseq
    %v125 = vand.u32 %v124, 127
    %vm126 = vcmp.eq.s32.totalorder %v125, 0
    %v127 = vmul.f32 %v123, %v121
    %128 = vadd.xlane.f32.xlu0 %v127
    %v129 = vpop.xlane.xlu0 %128
    %v130 = vsel %vm126, %v129, %v121
    %v131 = vrcp.pop %v44
    %v132 = vmul.f32 %v130, %v131
    %vm133 = vweird.f32 %v44
    %v134 = vsel %vm133, %v130, %v132
    %135 = vst [vmem:[#allocation1] sm:$0xff] %v134
    // Predicated region
    $region36: #{custom-call.9} parent=1 // pred_check
      _
    $region37: #{custom-call.9} parent=1 // pred_check_branch
      %137 = sbr.rel (0) target = $region39
    $region38: #{custom-call.9} parent=1 // pred_region
      // Predicated region
      $region40: #{custom-call.9} parent=38 // pred_check
        _
      $region41: #{custom-call.9} parent=38 // pred_check_branch
        %139 = sbr.rel (0) target = $region43
      $region42: #{custom-call.9} parent=38 // pred_region
        // Predicated region
        $region55: #{custom-call.9} parent=42 // pred_check
          _
        $region56: #{custom-call.9} parent=42 // pred_check_branch
          %154 = sbr.rel (0) target = $region58
        $region57: #{custom-call.9} parent=42 // pred_region
          loop: start=0, step=1, limit=1
          $region59: #{custom-call.9} parent=57 // loop_pre_header
            _
          $region60: #{custom-call.9} parent=57 // loop_header
            %s156 = sphi 0, %s160
            %p157 = scmp.ge.s32.totalorder %s156, 1
            %s161 = sphi [#allocation1], [#allocation1]
            %s162 = sphi %s1, %s1
          $region61: #{custom-call.9} parent=57 // loop_header_branch
            %159 = sbr.rel (%p157) target = $region65
          $region62: #{custom-call.9} parent=57 // loop_body
            %v163 = vld [vmem:[%s161] sm:$0xff]
            %164 = vst [vmem:[%s162] sm:$0xff] %v163
          $region63: #{custom-call.9} parent=57 // loop_footer
            %s160 = sadd.s32 1, %s156
          $region64: #{custom-call.9} parent=57 // loop_footer_branch
            %155 = sbr.rel target = $region60
          $region65: #{custom-call.9} parent=57 // loop_exit
            _
        $region58: #{custom-call.9} parent=42 // pred_fallthru
          _
        // Predicated region
        $region66: #{custom-call.9} parent=42 // pred_check
          _
        $region67: #{custom-call.9} parent=42 // pred_check_branch
          %166 = sbr.rel target = $region69
        $region68: #{custom-call.9} parent=42 // pred_region
          _
        $region69: #{custom-call.9} parent=42 // pred_fallthru
          _
      $region43: #{custom-call.9} parent=38 // pred_fallthru
        _
      // Predicated region
      $region44: #{custom-call.9} parent=38 // pred_check
        _
      $region45: #{custom-call.9} parent=38 // pred_check_branch
        %141 = sbr.rel target = $region47
      $region46: #{custom-call.9} parent=38 // pred_region
        loop: start=0, step=1, limit=1
        $region48: #{custom-call.9} parent=46 // loop_pre_header
          _
        $region49: #{custom-call.9} parent=46 // loop_header
          %s144 = sphi 0, %s148
          %p145 = scmp.ge.s32.totalorder %s144, 1
          %s149 = sphi [#allocation1], [#allocation1]
          %s150 = sphi %s1, %s1
        $region50: #{custom-call.9} parent=46 // loop_header_branch
          %147 = sbr.rel (%p145) target = $region54
        $region51: #{custom-call.9} parent=46 // loop_body
          %v151 = vld [vmem:[%s149] sm:$0xff]
          %152 = vst [vmem:[%s150] sm:$0xff] %v151
        $region52: #{custom-call.9} parent=46 // loop_footer
          %s148 = sadd.s32 1, %s144
        $region53: #{custom-call.9} parent=46 // loop_footer_branch
          %143 = sbr.rel target = $region49
        $region54: #{custom-call.9} parent=46 // loop_exit
          _
      $region47: #{custom-call.9} parent=38 // pred_fallthru
        _
    $region39: #{custom-call.9} parent=1 // pred_fallthru
      _
    %167 = vnop

// kernel: custom-call.10
$region0: #{custom-call.10}
  %s0 = inlined_call_operand.vmem [shape: f32[1,8,8], index: 0, kind: input, shape index: {}]
  %s1 = inlined_call_operand.vmem [shape: f32[1,8,8], index: 1, kind: output, shape index: {}]
  $region1: #{custom-call.10} parent=0
    #allocation0 [shape = 'u8[4096]{0}', space=vmem, size = 0x1000, scoped, tag = 'operand span for operand 0']
    #allocation1 [shape = 'u8[4096]{0}', space=vmem, size = 0x1000, scoped, tag = 'operand span for operand 1']
    #allocation2 [shape = 'f32[8,8]{1,0}', space=vmem, size = 0x1000, scoped, tag = 'rescaled input a']
    // Predicated region
    $region2: #{custom-call.10} parent=1 // pred_check
      _
    $region3: #{custom-call.10} parent=1 // pred_check_branch
      %3 = sbr.rel (0) target = $region5
    $region4: #{custom-call.10} parent=1 // pred_region
      // Predicated region
      $region6: #{custom-call.10} parent=4 // pred_check
        _
      $region7: #{custom-call.10} parent=4 // pred_check_branch
        %5 = sbr.rel (0) target = $region9
      $region8: #{custom-call.10} parent=4 // pred_region
        // Predicated region
        $region21: #{custom-call.10} parent=8 // pred_check
          _
        $region22: #{custom-call.10} parent=8 // pred_check_branch
          %20 = sbr.rel (0) target = $region24
        $region23: #{custom-call.10} parent=8 // pred_region
          loop: start=0, step=1, limit=1
          $region25: #{custom-call.10} parent=23 // loop_pre_header
            _
          $region26: #{custom-call.10} parent=23 // loop_header
            %s22 = sphi 0, %s26
            %p23 = scmp.ge.s32.totalorder %s22, 1
            %s27 = sphi %s0, %s0
            %s28 = sphi [#allocation0], [#allocation0]
          $region27: #{custom-call.10} parent=23 // loop_header_branch
            %25 = sbr.rel (%p23) target = $region31
          $region28: #{custom-call.10} parent=23 // loop_body
            %v29 = vld [vmem:[%s27] sm:$0xff]
            %30 = vst [vmem:[%s28] sm:$0xff] %v29
          $region29: #{custom-call.10} parent=23 // loop_footer
            %s26 = sadd.s32 1, %s22
          $region30: #{custom-call.10} parent=23 // loop_footer_branch
            %21 = sbr.rel target = $region26
          $region31: #{custom-call.10} parent=23 // loop_exit
            _
        $region24: #{custom-call.10} parent=8 // pred_fallthru
          _
        // Predicated region
        $region32: #{custom-call.10} parent=8 // pred_check
          _
        $region33: #{custom-call.10} parent=8 // pred_check_branch
          %32 = sbr.rel target = $region35
        $region34: #{custom-call.10} parent=8 // pred_region
          _
        $region35: #{custom-call.10} parent=8 // pred_fallthru
          _
      $region9: #{custom-call.10} parent=4 // pred_fallthru
        _
      // Predicated region
      $region10: #{custom-call.10} parent=4 // pred_check
        _
      $region11: #{custom-call.10} parent=4 // pred_check_branch
        %7 = sbr.rel target = $region13
      $region12: #{custom-call.10} parent=4 // pred_region
        loop: start=0, step=1, limit=1
        $region14: #{custom-call.10} parent=12 // loop_pre_header
          _
        $region15: #{custom-call.10} parent=12 // loop_header
          %s10 = sphi 0, %s14
          %p11 = scmp.ge.s32.totalorder %s10, 1
          %s15 = sphi %s0, %s0
          %s16 = sphi [#allocation0], [#allocation0]
        $region16: #{custom-call.10} parent=12 // loop_header_branch
          %13 = sbr.rel (%p11) target = $region20
        $region17: #{custom-call.10} parent=12 // loop_body
          %v17 = vld [vmem:[%s15] sm:$0xff]
          %18 = vst [vmem:[%s16] sm:$0xff] %v17
        $region18: #{custom-call.10} parent=12 // loop_footer
          %s14 = sadd.s32 1, %s10
        $region19: #{custom-call.10} parent=12 // loop_footer_branch
          %9 = sbr.rel target = $region15
        $region20: #{custom-call.10} parent=12 // loop_exit
          _
      $region13: #{custom-call.10} parent=4 // pred_fallthru
        _
    $region5: #{custom-call.10} parent=1 // pred_fallthru
      _
    %33 = vnop
    %v34 = vlaneseq
    %v35 = vand.u32 %v34, 127
    %vm36 = vcmp.lt.s32.totalorder %v35, 8
    %v37 = vlaneseq
    %v38 = vshrl.u32 %v37, 7
    %vm40 = vcmp.eq.s32.totalorder %v38, %v35
    %v41 = vld [vmem:[#allocation0] sm:$0xff]
    %v42 = vsel %vm40, %v41, 0.0
    %43 = vadd.xlane.f32.xlu0 %v42
    %v44 = vpop.xlane.xlu0 %43
    %vm45 = vcmp.ge.s32.totalorder %v38, %v35
    %vm46 = vmand %vm45, %vm36
    %v47 = vsel %vm46, %v41, 0.0
    %v48 = vrcp.pop %v44
    %v49 = vmul.f32 %v47, %v48
    %50 = vst [vmem:[#allocation2] sm:$0xff] %v49
    %v51 = vlaneseq
    %v52 = vand.u32 %v51, 127
    %v53 = vlaneseq
    %v54 = vshrl.u32 %v53, 7
    %vm56 = vcmp.eq.s32.totalorder %v52, %v54
    %v57 = vlaneseq
    %v58 = vand.u32 %v57, 127
    %vm59 = vcmp.eq.s32.totalorder %v58, 0
    %v60 = vsel %vm59, 1.0, -1.0
    %v61 = vsel %vm56, %v60, 0.0
    %s62 = scalar_lea.vmem [#allocation2], 1
    %v63 = vld [vmem:[%s62] ss:$0 sm:$0xff]
    %v64 = vxor.u32 %v63, 2147483648
    %v65 = vlaneseq
    %v66 = vand.u32 %v65, 127
    %vm67 = vcmp.eq.s32.totalorder %v66, 1
    %v68 = vmul.f32 %v64, %v61
    %69 = vadd.xlane.f32.xlu0 %v68
    %v70 = vpop.xlane.xlu0 %69
    %v71 = vsel %vm67, %v70, %v61
    %s72 = scalar_lea.vmem [#allocation2], 2
    %v73 = vld [vmem:[%s72] ss:$0 sm:$0xff]
    %v74 = vxor.u32 %v73, 2147483648
    %v75 = vlaneseq
    %v76 = vand.u32 %v75, 127
    %vm77 = vcmp.eq.s32.totalorder %v76, 2
    %v78 = vmul.f32 %v74, %v71
    %79 = vadd.xlane.f32.xlu0 %v78
    %v80 = vpop.xlane.xlu0 %79
    %v81 = vsel %vm77, %v80, %v71
    %s82 = scalar_lea.vmem [#allocation2], 3
    %v83 = vld [vmem:[%s82] ss:$0 sm:$0xff]
    %v84 = vxor.u32 %v83, 2147483648
    %v85 = vlaneseq
    %v86 = vand.u32 %v85, 127
    %vm87 = vcmp.eq.s32.totalorder %v86, 3
    %v88 = vmul.f32 %v84, %v81
    %89 = vadd.xlane.f32.xlu0 %v88
    %v90 = vpop.xlane.xlu0 %89
    %v91 = vsel %vm87, %v90, %v81
    %s92 = scalar_lea.vmem [#allocation2], 4
    %v93 = vld [vmem:[%s92] ss:$0 sm:$0xff]
    %v94 = vxor.u32 %v93, 2147483648
    %v95 = vlaneseq
    %v96 = vand.u32 %v95, 127
    %vm97 = vcmp.eq.s32.totalorder %v96, 4
    %v98 = vmul.f32 %v94, %v91
    %99 = vadd.xlane.f32.xlu0 %v98
    %v100 = vpop.xlane.xlu0 %99
    %v101 = vsel %vm97, %v100, %v91
    %s102 = scalar_lea.vmem [#allocation2], 5
    %v103 = vld [vmem:[%s102] ss:$0 sm:$0xff]
    %v104 = vxor.u32 %v103, 2147483648
    %v105 = vlaneseq
    %v106 = vand.u32 %v105, 127
    %vm107 = vcmp.eq.s32.totalorder %v106, 5
    %v108 = vmul.f32 %v104, %v101
    %109 = vadd.xlane.f32.xlu0 %v108
    %v110 = vpop.xlane.xlu0 %109
    %v111 = vsel %vm107, %v110, %v101
    %s112 = scalar_lea.vmem [#allocation2], 6
    %v113 = vld [vmem:[%s112] ss:$0 sm:$0xff]
    %v114 = vxor.u32 %v113, 2147483648
    %v115 = vlaneseq
    %v116 = vand.u32 %v115, 127
    %vm117 = vcmp.eq.s32.totalorder %v116, 6
    %v118 = vmul.f32 %v114, %v111
    %119 = vadd.xlane.f32.xlu0 %v118
    %v120 = vpop.xlane.xlu0 %119
    %v121 = vsel %vm117, %v120, %v111
    %s122 = scalar_lea.vmem [#allocation2], 7
    %v123 = vld [vmem:[%s122] ss:$0 sm:$0xff]
    %v124 = vxor.u32 %v123, 2147483648
    %v125 = vlaneseq
    %v126 = vand.u32 %v125, 127
    %vm127 = vcmp.eq.s32.totalorder %v126, 7
    %v128 = vmul.f32 %v124, %v121
    %129 = vadd.xlane.f32.xlu0 %v128
    %v130 = vpop.xlane.xlu0 %129
    %v131 = vsel %vm127, %v130, %v121
    %v132 = vrcp.pop %v44
    %v133 = vmul.f32 %v131, %v132
    %vm134 = vweird.f32 %v44
    %v135 = vsel %vm134, %v131, %v133
    %136 = vst [vmem:[#allocation1] sm:$0xff] %v135
    // Predicated region
    $region36: #{custom-call.10} parent=1 // pred_check
      _
    $region37: #{custom-call.10} parent=1 // pred_check_branch
      %138 = sbr.rel (0) target = $region39
    $region38: #{custom-call.10} parent=1 // pred_region
      // Predicated region
      $region40: #{custom-call.10} parent=38 // pred_check
        _
      $region41: #{custom-call.10} parent=38 // pred_check_branch
        %140 = sbr.rel (0) target = $region43
      $region42: #{custom-call.10} parent=38 // pred_region
        // Predicated region
        $region55: #{custom-call.10} parent=42 // pred_check
          _
        $region56: #{custom-call.10} parent=42 // pred_check_branch
          %155 = sbr.rel (0) target = $region58
        $region57: #{custom-call.10} parent=42 // pred_region
          loop: start=0, step=1, limit=1
          $region59: #{custom-call.10} parent=57 // loop_pre_header
            _
          $region60: #{custom-call.10} parent=57 // loop_header
            %s157 = sphi 0, %s161
            %p158 = scmp.ge.s32.totalorder %s157, 1
            %s162 = sphi [#allocation1], [#allocation1]
            %s163 = sphi %s1, %s1
          $region61: #{custom-call.10} parent=57 // loop_header_branch
            %160 = sbr.rel (%p158) target = $region65
          $region62: #{custom-call.10} parent=57 // loop_body
            %v164 = vld [vmem:[%s162] sm:$0xff]
            %165 = vst [vmem:[%s163] sm:$0xff] %v164
          $region63: #{custom-call.10} parent=57 // loop_footer
            %s161 = sadd.s32 1, %s157
          $region64: #{custom-call.10} parent=57 // loop_footer_branch
            %156 = sbr.rel target = $region60
          $region65: #{custom-call.10} parent=57 // loop_exit
            _
        $region58: #{custom-call.10} parent=42 // pred_fallthru
          _
        // Predicated region
        $region66: #{custom-call.10} parent=42 // pred_check
          _
        $region67: #{custom-call.10} parent=42 // pred_check_branch
          %167 = sbr.rel target = $region69
        $region68: #{custom-call.10} parent=42 // pred_region
          _
        $region69: #{custom-call.10} parent=42 // pred_fallthru
          _
      $region43: #{custom-call.10} parent=38 // pred_fallthru
        _
      // Predicated region
      $region44: #{custom-call.10} parent=38 // pred_check
        _
      $region45: #{custom-call.10} parent=38 // pred_check_branch
        %142 = sbr.rel target = $region47
      $region46: #{custom-call.10} parent=38 // pred_region
        loop: start=0, step=1, limit=1
        $region48: #{custom-call.10} parent=46 // loop_pre_header
          _
        $region49: #{custom-call.10} parent=46 // loop_header
          %s145 = sphi 0, %s149
          %p146 = scmp.ge.s32.totalorder %s145, 1
          %s150 = sphi [#allocation1], [#allocation1]
          %s151 = sphi %s1, %s1
        $region50: #{custom-call.10} parent=46 // loop_header_branch
          %148 = sbr.rel (%p146) target = $region54
        $region51: #{custom-call.10} parent=46 // loop_body
          %v152 = vld [vmem:[%s150] sm:$0xff]
          %153 = vst [vmem:[%s151] sm:$0xff] %v152
        $region52: #{custom-call.10} parent=46 // loop_footer
          %s149 = sadd.s32 1, %s145
        $region53: #{custom-call.10} parent=46 // loop_footer_branch
          %144 = sbr.rel target = $region49
        $region54: #{custom-call.10} parent=46 // loop_exit
          _
      $region47: #{custom-call.10} parent=38 // pred_fallthru
        _
    $region39: #{custom-call.10} parent=1 // pred_fallthru
      _
    %168 = vnop

// kernel: squeeze.15
$region0: #{squeeze.15}
  %s0 = inlined_call_operand.vmem [shape: f32[1,3,2], index: 0, kind: input, shape index: {}]
  %s1 = inlined_call_operand.vmem [shape: f32[6], index: 1, kind: output, shape index: {}]
  $region1: #{squeeze.15} parent=0
    #allocation0 [shape = 'u8[4096]{0}', space=vmem, size = 0x1000, scoped, tag = 'scoped mem for output reshape']
    #allocation1 [shape = 'u8[4096]{0}', space=vmem, size = 0x1000, scoped, tag = 'scoped mem for input reshape']
    %s3 = sshllo.u32 0, 4
    %v4 = vld [vmem:[%s0] sm:%s3]
    %5 = vst [vmem:[#allocation1] sm:%s3] %v4
    %v6 = vld [vmem:[#allocation1] sm:$0x1]
    %vm7 = vcmask 15360
    %8 = vst.msk [vmem:[#allocation0] sm:$0x1] %vm7, %v6
    %s9 = scalar_lea.vmem [#allocation1], 2
    %v10 = vld [vmem:[%s9] sm:$0x1]
    %11 = vrot.lane.b32.xlu0 %v10, 4
    %v12 = vpop.permute.xlu0 %11
    %vm13 = vcmask 48160
    %14 = vst.msk [vmem:[#allocation0] sm:$0x1] %vm13, %v12
    %s15 = scalar_lea.vmem [#allocation1], 1
    %v16 = vld [vmem:[%s15] sm:$0x1]
    %17 = vrot.lane.b32.xlu0 %v16, 2
    %v18 = vpop.permute.xlu0 %17
    %vm19 = vcmask 31760
    %20 = vst.msk [vmem:[#allocation0] sm:$0x1] %vm19, %v18
    %s22 = sshllo.u32 0, 1
    %v24 = vld [vmem:[#allocation0] sm:%s22]
    %s25 = sshllo.u32 0, 1
    %26 = vst [vmem:[%s1] sm:%s25] %v24

// kernel: squeeze.14
$region0: #{squeeze.14}
  %s0 = inlined_call_operand.vmem [shape: f32[1,5,2], index: 0, kind: input, shape index: {}]
  %s1 = inlined_call_operand.vmem [shape: f32[10], index: 1, kind: output, shape index: {}]
  $region1: #{squeeze.14} parent=0
    #allocation0 [shape = 'u8[4096]{0}', space=vmem, size = 0x1000, scoped, tag = 'scoped mem for output reshape']
    %v2 = vld [vmem:[%s0] sm:$0x1]
    %vm3 = vcmask 15360
    %4 = vst.msk [vmem:[#allocation0] sm:$0x1] %vm3, %v2
    %s5 = scalar_lea.vmem %s0, 4
    %v6 = vld [vmem:[%s5] sm:$0x1]
    %7 = vrot.lane.b32.xlu0 %v6, 8
    %v8 = vpop.permute.xlu0 %7
    %vm9 = vcmask 80960
    %10 = vst.msk [vmem:[#allocation0] sm:$0x1] %vm9, %v8
    %s11 = scalar_lea.vmem %s0, 3
    %v12 = vld [vmem:[%s11] sm:$0x1]
    %13 = vrot.lane.b32.xlu0 %v12, 6
    %v14 = vpop.permute.xlu0 %13
    %vm15 = vcmask 64560
    %16 = vst.msk [vmem:[#allocation0] sm:$0x1] %vm15, %v14
    %s17 = scalar_lea.vmem %s0, 2
    %v18 = vld [vmem:[%s17] sm:$0x1]
    %19 = vrot.lane.b32.xlu0 %v18, 4
    %v20 = vpop.permute.xlu0 %19
    %vm21 = vcmask 48160
    %22 = vst.msk [vmem:[#allocation0] sm:$0x1] %vm21, %v20
    %s23 = scalar_lea.vmem %s0, 1
    %v24 = vld [vmem:[%s23] sm:$0x1]
    %25 = vrot.lane.b32.xlu0 %v24, 2
    %v26 = vpop.permute.xlu0 %25
    %vm27 = vcmask 31760
    %28 = vst.msk [vmem:[#allocation0] sm:$0x1] %vm27, %v26
    %s30 = sshllo.u32 0, 1
    %v32 = vld [vmem:[#allocation0] sm:%s30]
    %s33 = sshllo.u32 0, 1
    %34 = vst [vmem:[%s1] sm:%s33] %v32

// kernel: mul.58
$region0: #{mul.58}
  %s0 = inlined_call_operand.vmem [shape: f32[16,16], index: 0, kind: input, shape index: {}]
  %s1 = inlined_call_operand.vmem [shape: f32[256], index: 1, kind: output, shape index: {}]
  $region1: #{mul.58} parent=0
    #allocation0 [shape = 'u8[4096]{0}', space=vmem, size = 0x1000, scoped, tag = 'scoped mem for output reshape']
    %s2 = smov 3
    %v3 = vld [vmem:[%s0] ss:$8 sm:%s2]
    %vm4 = vcmask 130048
    %5 = vst.msk [vmem:[#allocation0] sm:$0x3] %vm4, %v3
    %s6 = scalar_lea.vmem %s0, 7
    %s7 = smov 3
    %v8 = vld [vmem:[%s6] ss:$8 sm:%s7]
    %9 = vrot.lane.b32.xlu0 %v8, 112
    %v10 = vpop.permute.xlu0 %9
    %vm11 = vcmask 1048448
    %12 = vst.msk [vmem:[#allocation0] sm:$0x3] %vm11, %v10
    %s13 = scalar_lea.vmem %s0, 6
    %s14 = smov 3
    %v15 = vld [vmem:[%s13] ss:$8 sm:%s14]
    %16 = vrot.lane.b32.xlu0 %v15, 96
    %v17 = vpop.permute.xlu0 %16
    %vm18 = vcmask 917248
    %19 = vst.msk [vmem:[#allocation0] sm:$0x3] %vm18, %v17
    %s20 = scalar_lea.vmem %s0, 5
    %s21 = smov 3
    %v22 = vld [vmem:[%s20] ss:$8 sm:%s21]
    %23 = vrot.lane.b32.xlu0 %v22, 80
    %v24 = vpop.permute.xlu0 %23
    %vm25 = vcmask 786048
    %26 = vst.msk [vmem:[#allocation0] sm:$0x3] %vm25, %v24
    %s27 = scalar_lea.vmem %s0, 4
    %s28 = smov 3
    %v29 = vld [vmem:[%s27] ss:$8 sm:%s28]
    %30 = vrot.lane.b32.xlu0 %v29, 64
    %v31 = vpop.permute.xlu0 %30
    %vm32 = vcmask 654848
    %33 = vst.msk [vmem:[#allocation0] sm:$0x3] %vm32, %v31
    %s34 = scalar_lea.vmem %s0, 3
    %s35 = smov 3
    %v36 = vld [vmem:[%s34] ss:$8 sm:%s35]
    %37 = vrot.lane.b32.xlu0 %v36, 48
    %v38 = vpop.permute.xlu0 %37
    %vm39 = vcmask 523648
    %40 = vst.msk [vmem:[#allocation0] sm:$0x3] %vm39, %v38
    %s41 = scalar_lea.vmem %s0, 2
    %s42 = smov 3
    %v43 = vld [vmem:[%s41] ss:$8 sm:%s42]
    %44 = vrot.lane.b32.xlu0 %v43, 32
    %v45 = vpop.permute.xlu0 %44
    %vm46 = vcmask 392448
    %47 = vst.msk [vmem:[#allocation0] sm:$0x3] %vm46, %v45
    %s48 = scalar_lea.vmem %s0, 1
    %s49 = smov 3
    %v50 = vld [vmem:[%s48] ss:$8 sm:%s49]
    %51 = vrot.lane.b32.xlu0 %v50, 16
    %v52 = vpop.permute.xlu0 %51
    %vm53 = vcmask 261248
    %54 = vst.msk [vmem:[#allocation0] sm:$0x3] %vm53, %v52
    %s56 = sshllo.u32 0, 2
    %v58 = vld [vmem:[#allocation0] sm:%s56]
    %s59 = sshllo.u32 0, 2
    %60 = vst [vmem:[%s1] sm:%s59] %v58

// kernel: tps_warp_forward.1
$region0: #{tps_warp_forward.1}
  #allocation0 [shape = 'u32[]', space=smem, size = 0x4, offset = 0x4, fixed_abs, tag = 'smem constant byte address 0x4 - core index']
  #allocation1 [shape = 'u32[144,128]{1,0:T(1,128)}', space=vmem, size = 0x12000, scoped, tag = 'internal scratch']
  %s0 = inlined_call_operand.vmem [shape: f32[26], index: 0, kind: input, shape index: {}]
  %s1 = inlined_call_operand.vmem [shape: f32[16,128], index: 1, kind: output, shape index: {0}]
  %s2 = inlined_call_operand.vmem [shape: f32[16,128], index: 2, kind: output, shape index: {1}]
  %3 = xla_tuple %s1, %s2
  %s4 = sld [smem:[#allocation0]]
  $region26: #{tps_warp_forward.1} parent=0
    _
  %s6 = ssub.s32 1, %s4
  %s7 = scalar_select 0, %s6, %s4
  $region1: #{tps_warp_forward.1} parent=0
    #allocation2 [shape = 'u8[512]{0}', space=smem, size = 0x200, scoped, tag = 'input window, operand 0, single buffered']
    #allocation3 [shape = 's32[1]{0}', space=sflag, size = 0x4, scoped, tag = 'scoped memory for tps_warp_forward.1']
    %8 = vsyncpa [#allocation3], 0
    // Predicated region
    $region2: #{tps_warp_forward.1} parent=1 // pred_check
      _
    $region3: #{tps_warp_forward.1} parent=1 // pred_check_branch
      %10 = sbr.rel (0) target = $region5
    $region4: #{tps_warp_forward.1} parent=1 // pred_region
      %s12 = ssub.s32 16, 16
      %13 = vsyncadd [#allocation3], %s12
      %s15 = sshll.u32 %s0, 4
      %s16 = int_to_ptr.vmem [resolvable:$true] %s15
      %18 = dma.vmem_to_smem %s16, 16, [#allocation2], [#allocation3]
    $region5: #{tps_warp_forward.1} parent=1 // pred_fallthru
      _
    // Predicated region
    $region6: #{tps_warp_forward.1} parent=1 // pred_check
      _
    $region7: #{tps_warp_forward.1} parent=1 // pred_check_branch
      %20 = sbr.rel (0) target = $region9
    $region8: #{tps_warp_forward.1} parent=1 // pred_region
      %21 = dma.done [#allocation3], 16
    $region9: #{tps_warp_forward.1} parent=1 // pred_fallthru
      _
    %22 = sfence
    %v23 = vlaneseq
    %v24 = vshrl.u32 %v23, 7
    %v25 = vadd.s32 %v24, 8
    %v26 = vcvt.s32.f32 %v24
    %v27 = vcvt.s32.f32 %v25
    %v28 = vlaneseq
    %v29 = vand.u32 %v28, 127
    %v30 = vcvt.s32.f32 %v29
    %s31 = smul.u32 0, 16
    %s32 = scvt.s32.f32 %s31
    %v33 = vstv %s32
    %v34 = vadd.f32 %v26, %v33
    %v35 = vadd.f32 %v27, %v33
    %s36 = smul.u32 0, 128
    %s37 = scvt.s32.f32 %s36
    %v38 = vstv %s37
    %v39 = vadd.f32 %v30, %v38
    %v40 = vmul.f32 %v34, 0.13333334
    %v41 = vmul.f32 %v35, 0.13333334
    %v42 = vsub.f32 %v40, 1.0
    %v43 = vsub.f32 %v41, 1.0
    %v44 = vmul.f32 %v39, 0.13333334
    %v45 = vsub.f32 %v44, 1.0
    %s46 = sld [smem:[#allocation2 + $0x16]]
    %v47 = vstv %s46
    %v48 = vmul.f32 %v45, %v47
    %s49 = sld [smem:[#allocation2 + $0x18]]
    %v50 = vstv %s49
    %v51 = vmul.f32 %v42, %v50
    %v52 = vmul.f32 %v43, %v50
    %s53 = sld [smem:[#allocation2 + $0x14]]
    %v54 = vstv %s53
    %v55 = vadd.f32 %v51, %v54
    %v56 = vadd.f32 %v52, %v54
    %v57 = vadd.f32 %v48, %v55
    %v58 = vadd.f32 %v48, %v56
    %s59 = sld [smem:[#allocation2 + $0x17]]
    %v60 = vstv %s59
    %v61 = vmul.f32 %v45, %v60
    %s62 = sld [smem:[#allocation2 + $0x19]]
    %v63 = vstv %s62
    %v64 = vmul.f32 %v42, %v63
    %v65 = vmul.f32 %v43, %v63
    %s66 = sld [smem:[#allocation2 + $0x15]]
    %v67 = vstv %s66
    %v68 = vadd.f32 %v64, %v67
    %v69 = vadd.f32 %v65, %v67
    %v70 = vadd.f32 %v61, %v68
    %v71 = vadd.f32 %v61, %v69
    %s72 = sld [smem:[#allocation2]]
    %v73 = vstv %s72
    %v74 = vsub.f32 %v45, %v73
    %s75 = sld [smem:[#allocation2 + $0x1]]
    %v76 = vstv %s75
    %v77 = vsub.f32 %v42, %v76
    %v78 = vsub.f32 %v43, %v76
    %v79 = vmul.f32 %v74, %v74
    %v80 = vmul.f32 %v77, %v77
    %v81 = vmul.f32 %v78, %v78
    %v82 = vadd.f32 %v79, %v80
    %v83 = vadd.f32 %v79, %v81
    %v84 = vmul.f32 %v82, 0.5
    %v85 = vmul.f32 %v83, 0.5
    %v86 = vadd.f32 %v82, 1e-08
    %v87 = vadd.f32 %v83, 1e-08
    %v88 = vlog2.pop %v86
    %v89 = vmul.f32 %v88, 0.6931472
    %v90 = vlog2.pop %v87
    %v91 = vmul.f32 %v90, 0.6931472
    %v92 = vmul.f32 %v84, %v89
    %v93 = vmul.f32 %v85, %v91
    %s94 = sld [smem:[#allocation2 + $0xa]]
    %v95 = vstv %s94
    %v96 = vmul.f32 %v92, %v95
    %v97 = vmul.f32 %v93, %v95
    %v98 = vadd.f32 %v57, %v96
    %v99 = vadd.f32 %v58, %v97
    %s100 = sld [smem:[#allocation2 + $0xb]]
    %v101 = vstv %s100
    %v102 = vmul.f32 %v92, %v101
    %v103 = vmul.f32 %v93, %v101
    %v104 = vadd.f32 %v70, %v102
    %v105 = vadd.f32 %v71, %v103
    %s106 = sld [smem:[#allocation2 + $0x2]]
    %v107 = vstv %s106
    %v108 = vsub.f32 %v45, %v107
    %s109 = sld [smem:[#allocation2 + $0x3]]
    %v110 = vstv %s109
    %v111 = vsub.f32 %v42, %v110
    %v112 = vsub.f32 %v43, %v110
    %v113 = vmul.f32 %v108, %v108
    %v114 = vmul.f32 %v111, %v111
    %v115 = vmul.f32 %v112, %v112
    %v116 = vadd.f32 %v113, %v114
    %v117 = vadd.f32 %v113, %v115
    %v118 = vmul.f32 %v116, 0.5
    %v119 = vmul.f32 %v117, 0.5
    %v120 = vadd.f32 %v116, 1e-08
    %v121 = vadd.f32 %v117, 1e-08
    %v122 = vlog2.pop %v120
    %v123 = vmul.f32 %v122, 0.6931472
    %v124 = vlog2.pop %v121
    %v125 = vmul.f32 %v124, 0.6931472
    %v126 = vmul.f32 %v118, %v123
    %v127 = vmul.f32 %v119, %v125
    %s128 = sld [smem:[#allocation2 + $0xc]]
    %v129 = vstv %s128
    %v130 = vmul.f32 %v126, %v129
    %v131 = vmul.f32 %v127, %v129
    %v132 = vadd.f32 %v98, %v130
    %v133 = vadd.f32 %v99, %v131
    %s134 = sld [smem:[#allocation2 + $0xd]]
    %v135 = vstv %s134
    %v136 = vmul.f32 %v126, %v135
    %v137 = vmul.f32 %v127, %v135
    %v138 = vadd.f32 %v104, %v136
    %v139 = vadd.f32 %v105, %v137
    %s140 = sld [smem:[#allocation2 + $0x4]]
    %v141 = vstv %s140
    %v142 = vsub.f32 %v45, %v141
    %s143 = sld [smem:[#allocation2 + $0x5]]
    %v144 = vstv %s143
    %v145 = vsub.f32 %v42, %v144
    %v146 = vsub.f32 %v43, %v144
    %v147 = vmul.f32 %v142, %v142
    %v148 = vmul.f32 %v145, %v145
    %v149 = vmul.f32 %v146, %v146
    %v150 = vadd.f32 %v147, %v148
    %v151 = vadd.f32 %v147, %v149
    %v152 = vmul.f32 %v150, 0.5
    %v153 = vmul.f32 %v151, 0.5
    %v154 = vadd.f32 %v150, 1e-08
    %v155 = vadd.f32 %v151, 1e-08
    %v156 = vlog2.pop %v154
    %v157 = vmul.f32 %v156, 0.6931472
    %v158 = vlog2.pop %v155
    %v159 = vmul.f32 %v158, 0.6931472
    %v160 = vmul.f32 %v152, %v157
    %v161 = vmul.f32 %v153, %v159
    %s162 = sld [smem:[#allocation2 + $0xe]]
    %v163 = vstv %s162
    %v164 = vmul.f32 %v160, %v163
    %v165 = vmul.f32 %v161, %v163
    %v166 = vadd.f32 %v132, %v164
    %v167 = vadd.f32 %v133, %v165
    %s168 = sld [smem:[#allocation2 + $0xf]]
    %v169 = vstv %s168
    %v170 = vmul.f32 %v160, %v169
    %v171 = vmul.f32 %v161, %v169
    %v172 = vadd.f32 %v138, %v170
    %v173 = vadd.f32 %v139, %v171
    %s174 = sld [smem:[#allocation2 + $0x6]]
    %v175 = vstv %s174
    %v176 = vsub.f32 %v45, %v175
    %s177 = sld [smem:[#allocation2 + $0x7]]
    %v178 = vstv %s177
    %v179 = vsub.f32 %v42, %v178
    %v180 = vsub.f32 %v43, %v178
    %v181 = vmul.f32 %v176, %v176
    %v182 = vmul.f32 %v179, %v179
    %v183 = vmul.f32 %v180, %v180
    %v184 = vadd.f32 %v181, %v182
    %v185 = vadd.f32 %v181, %v183
    %v186 = vmul.f32 %v184, 0.5
    %v187 = vmul.f32 %v185, 0.5
    %v188 = vadd.f32 %v184, 1e-08
    %v189 = vadd.f32 %v185, 1e-08
    %v190 = vlog2.pop %v188
    %v191 = vmul.f32 %v190, 0.6931472
    %v192 = vlog2.pop %v189
    %v193 = vmul.f32 %v192, 0.6931472
    %v194 = vmul.f32 %v186, %v191
    %v195 = vmul.f32 %v187, %v193
    %s196 = sld [smem:[#allocation2 + $0x10]]
    %v197 = vstv %s196
    %v198 = vmul.f32 %v194, %v197
    %v199 = vmul.f32 %v195, %v197
    %v200 = vadd.f32 %v166, %v198
    %v201 = vadd.f32 %v167, %v199
    %s202 = sld [smem:[#allocation2 + $0x11]]
    %v203 = vstv %s202
    %v204 = vmul.f32 %v194, %v203
    %v205 = vmul.f32 %v195, %v203
    %v206 = vadd.f32 %v172, %v204
    %v207 = vadd.f32 %v173, %v205
    %s208 = sld [smem:[#allocation2 + $0x8]]
    %v209 = vstv %s208
    %v210 = vsub.f32 %v45, %v209
    %s211 = sld [smem:[#allocation2 + $0x9]]
    %v212 = vstv %s211
    %v213 = vsub.f32 %v42, %v212
    %v214 = vsub.f32 %v43, %v212
    %v215 = vmul.f32 %v210, %v210
    %v216 = vmul.f32 %v213, %v213
    %v217 = vmul.f32 %v214, %v214
    %v218 = vadd.f32 %v215, %v216
    %v219 = vadd.f32 %v215, %v217
    %v220 = vmul.f32 %v218, 0.5
    %v221 = vmul.f32 %v219, 0.5
    %v222 = vadd.f32 %v218, 1e-08
    %v223 = vadd.f32 %v219, 1e-08
    %v224 = vlog2.pop %v222
    %v225 = vmul.f32 %v224, 0.6931472
    %v226 = vlog2.pop %v223
    %v227 = vmul.f32 %v226, 0.6931472
    %v228 = vmul.f32 %v220, %v225
    %v229 = vmul.f32 %v221, %v227
    %s230 = sld [smem:[#allocation2 + $0x12]]
    %v231 = vstv %s230
    %v232 = vmul.f32 %v228, %v231
    %v233 = vmul.f32 %v229, %v231
    %v234 = vadd.f32 %v200, %v232
    %v235 = vadd.f32 %v201, %v233
    %s236 = sld [smem:[#allocation2 + $0x13]]
    %v237 = vstv %s236
    %v238 = vmul.f32 %v228, %v237
    %v239 = vmul.f32 %v229, %v237
    %v240 = vadd.f32 %v206, %v238
    %v241 = vadd.f32 %v207, %v239
    %242 = vst [vmem:[%s1] sm:$0xff] %v234
    %243 = vst [vmem:[%s1 + $0x8] sm:$0xff] %v235
    %244 = vst [vmem:[%s2] sm:$0xff] %v240
    %245 = vst [vmem:[%s2 + $0x8] sm:$0xff] %v241
    // Predicated region
    $region10: #{tps_warp_forward.1} parent=1 // pred_check
      _
    $region11: #{tps_warp_forward.1} parent=1 // pred_check_branch
      %247 = sbr.rel (0) target = $region13
    $region12: #{tps_warp_forward.1} parent=1 // pred_region
      _
    $region13: #{tps_warp_forward.1} parent=1 // pred_fallthru
      _
    // Predicated region
    $region14: #{tps_warp_forward.1} parent=1 // pred_check
      _
    $region15: #{tps_warp_forward.1} parent=1 // pred_check_branch
      %249 = sbr.rel (0) target = $region17
    $region16: #{tps_warp_forward.1} parent=1 // pred_region
      _
    $region17: #{tps_warp_forward.1} parent=1 // pred_fallthru
      _
    // Predicated region
    $region18: #{tps_warp_forward.1} parent=1 // pred_check
      _
    $region19: #{tps_warp_forward.1} parent=1 // pred_check_branch
      %251 = sbr.rel (0) target = $region21
    $region20: #{tps_warp_forward.1} parent=1 // pred_region
      _
    $region21: #{tps_warp_forward.1} parent=1 // pred_fallthru
      _
    // Predicated region
    $region22: #{tps_warp_forward.1} parent=1 // pred_check
      _
    $region23: #{tps_warp_forward.1} parent=1 // pred_check_branch
      %253 = sbr.rel (0) target = $region25
    $region24: #{tps_warp_forward.1} parent=1 // pred_region
      _
    $region25: #{tps_warp_forward.1} parent=1 // pred_fallthru
      _
    %254 = vsyncpa [#allocation3], 1

</llo_original>
